<compile_context>
chip_gen: v7x
topology: tpu7x:2x2x1
jax: 0.10.0
libtpu: 0.0.40
codegen_flags: <defaults>
</compile_context>

<pallas_src>
import jax
import jax.numpy as jnp
from jax.experimental import pallas as pl
from jax.experimental.pallas import tpu as pltpu

_HIGHEST = jax.lax.Precision.HIGHEST


# ----------------------------------------------------------------------------
# Laplacian (glue, plain JAX — tiny diag/elementwise work)
# ----------------------------------------------------------------------------
def get_laplacian(graph, normalize=True):
    if normalize:
        deg = jnp.sum(graph, axis=-1)
        # Guard zero-degree (isolated) nodes: deg**-0.5 would be inf -> NaN.
        safe = jnp.where(deg > 0, deg, 1.0)
        d = jnp.where(deg > 0, safe ** (-0.5), 0.0)
        L = jnp.eye(graph.shape[0], dtype=graph.dtype) - graph * d[:, None] * d[None, :]
    else:
        L = jnp.diag(jnp.sum(graph, axis=-1)) - graph
    return L


# ----------------------------------------------------------------------------
# Fused Pallas kernel (one batch-group tile per grid step)
# ----------------------------------------------------------------------------
def _cheb_conv_fused_kernel(lt_ref, xt_ref, wt_ref, b_ref, o_ref):
    """out^T_tile = Wt @ [Yt_0; Yt_1; ...; Yt_{K-1}] + bias.

    lt_ref : (N, N)          L^T, VMEM resident across the whole grid
    xt_ref : (G*C, N)        X^T for this batch group (N on lanes -> dense)
    wt_ref : (G*D, K*G*C)    group weights (block-diag over G, stacked over K)
    b_ref  : (G*D, 1)        bias, replicated per batch element in the group
    o_ref  : (G*D, N)        out^T for this batch group (lane-dense store)
    """
    gc = xt_ref.shape[0]
    K = wt_ref.shape[1] // gc               # static (trace-time) Chebyshev count

    lt = lt_ref[...]                        # (N, N) f32, resident

    # Transposed Chebyshev recurrence (K is small -> statically unrolled).
    yt_km2 = xt_ref[...]                    # Yt_0 = X^T
    ys = [yt_km2]
    if K > 1:
        yt_km1 = jnp.dot(yt_km2, lt, preferred_element_type=jnp.float32,
                         precision=_HIGHEST)
        ys.append(yt_km1)
        for _ in range(2, K):
            yt_k = 2.0 * jnp.dot(yt_km1, lt, preferred_element_type=jnp.float32,
                                 precision=_HIGHEST) - yt_km2
            ys.append(yt_k)
            yt_km2, yt_km1 = yt_km1, yt_k

    # Fused projection: one (G*D, K*G*C) @ (K*G*C, N) matmul instead of K
    # separate dots + K-1 accumulator read-modify-write passes.
    ystack = jnp.concatenate(ys, axis=0) if K > 1 else ys[0]
    acc = jnp.dot(wt_ref[...], ystack, preferred_element_type=jnp.float32,
                  precision=_HIGHEST)
    o_ref[...] = acc + jnp.broadcast_to(b_ref[...], acc.shape)


# ----------------------------------------------------------------------------
# Wrapper
# ----------------------------------------------------------------------------
def _pick_batch_group(B, C, D, min_cols=256):
    """Smallest batch group reaching ~min_cols folded columns, sublane aligned;
    otherwise the largest aligned group; otherwise the whole batch (full-array
    blocks are always legal)."""
    valid = [g for g in range(1, B + 1)
             if B % g == 0 and (g * C) % 8 == 0 and (g * D) % 8 == 0]
    if not valid:
        return B
    for g in valid:
        if g * C >= min_cols:
            return g
    return valid[-1]


def cheb_conv_forward(x, graph, weight, bias, normalize=True, batch_group_size=None):
    """ChebConv forward.  x: [B,N,C], graph: [N,N], weight: [K,1,C,D], bias: [1,1,D].

    Returns [B, N, D] (matching the PyTorch module)."""
    x = x.astype(jnp.float32)
    B, N, C = x.shape
    K = weight.shape[0]
    D = weight.shape[-1]

    if batch_group_size is None:
        G = _pick_batch_group(B, C, D)
    else:
        G = int(batch_group_size)
        if B % G != 0:
            raise ValueError("batch_group_size must divide the batch size")
        if G != B and ((G * C) % 8 != 0 or (G * D) % 8 != 0):
            raise ValueError("per-group folded widths must be sublane (8) aligned")
    num_groups = B // G

    # VMEM budget (sized for v7x's 64 MiB/TC floor).
    est_bytes = 4 * (
        2 * (N * N)                                   # L^T (pipeline buffers)
        + 2 * (G * D * K * G * C) + 2 * (G * D)       # weights + bias
        + 2 * (G * C * N) + 2 * (G * D * N)           # Xt / out tiles (double-buffered)
        + (K + 3) * (G * C * N) + (G * D * N)         # Y stack, recurrence temps, acc
    )
    if est_bytes > 50 * 1024 * 1024:
        # TODO(synk): row-tile L (grid over N-tiles with a full-Y VMEM scratch)
        # once 4*N^2 + working set no longer fits a single TensorCore's VMEM.
        raise NotImplementedError(
            f"graph too large for the single-resident-L kernel (~{est_bytes >> 20} MiB)")
    vmem_limit = int(min(56 * 1024 * 1024, max(2 * est_bytes, 16 * 1024 * 1024)))

    # Laplacian (tiny, plain JAX).  The kernel runs the transposed recurrence
    # Yt_k = 2 * Yt_{k-1} @ L^T - Yt_{k-2}, so it is handed L^T.
    L = get_laplacian(graph.astype(jnp.float32), normalize)
    lt = jnp.transpose(L)

    # Lane-dense activations: Xt[b*C + c, n] = x[b, n, c]  -> (B*C, N).
    xt = jnp.transpose(x, (0, 2, 1)).reshape(B * C, N)

    # Group projection weights, block-diagonal over the G batch elements of a
    # group and stacked over K along the contraction dim:
    #   Wt[g*D + d, k*G*C + h*C + c] = W[k, c, d] * (g == h)
    # TODO(synk): at large per-group widths the block-diagonal expansion
    # inflates projection FLOPs/VMEM by G; switch to a per-batch (D, K*C)
    # weight with a batched dot once group sizes grow.
    w = weight.reshape(K, C, D).astype(jnp.float32)
    eye_g = jnp.eye(G, dtype=jnp.float32)
    wt = jnp.einsum("gh,kcd->gdkhc", eye_g, w).reshape(G * D, K * G * C)

    b_col = jnp.tile(bias.reshape(D).astype(jnp.float32), (G,)).reshape(G * D, 1)

    out_t = pl.pallas_call(
        _cheb_conv_fused_kernel,
        out_shape=jax.ShapeDtypeStruct((B * D, N), jnp.float32),
        grid_spec=pltpu.PrefetchScalarGridSpec(
            num_scalar_prefetch=0,
            grid=(num_groups,),
            in_specs=[
                pl.BlockSpec((N, N), lambda g: (0, 0)),              # L^T (resident)
                pl.BlockSpec((G * C, N), lambda g: (g, 0)),          # Xt tile
                pl.BlockSpec((G * D, K * G * C), lambda g: (0, 0)),  # weights (resident)
                pl.BlockSpec((G * D, 1), lambda g: (0, 0)),          # bias (resident)
            ],
            out_specs=pl.BlockSpec((G * D, N), lambda g: (g, 0)),    # out^T tile
        ),
        compiler_params=pltpu.CompilerParams(
            dimension_semantics=("parallel",),
            vmem_limit_bytes=vmem_limit,
        ),
    )(lt, xt, wt, b_col)

    # Un-fold: (B*D, N) -> [B, N, D].
    # TODO(synk): downstream consumers that can take the lane-dense [B, D, N]
    # layout should skip this transpose (one extra HBM round trip on the output).
    return out_t.reshape(B, D, N).transpose(0, 2, 1)


# ----------------------------------------------------------------------------
# Pure-JAX reference (mirrors the PyTorch forward exactly) for verification
# ----------------------------------------------------------------------------
def cheb_conv_reference(x, graph, weight, bias, normalize=True):
    L = get_laplacian(graph.astype(jnp.float32), normalize)
    K, N = weight.shape[0], graph.shape[0]
    polys = [jnp.eye(N, dtype=jnp.float32)]
    if K > 1:
        polys.append(L)
        for k in range(2, K):
            polys.append(2.0 * jnp.matmul(L, polys[k - 1], precision=_HIGHEST)
                         - polys[k - 2])
    mul_L = jnp.stack(polys[:K])[:, None]                           # [K,1,N,N]
    result = jnp.matmul(mul_L, x[None], precision=_HIGHEST)         # [K,B,N,C]
    result = jnp.matmul(result, weight, precision=_HIGHEST)         # [K,B,N,D]
    return jnp.sum(result, axis=0) + bias                           # [B,N,D]


if __name__ == "__main__":
    # Small deterministic setup: B=4, N=16 nodes, in_c=4, out_c=8, K order=3.
    B, N, in_c, out_c, K_order = 4, 16, 4, 8, 3
    K = K_order + 1

    key = jax.random.PRNGKey(0)
    kx, kg, kw, kb = jax.random.split(key, 4)

    x = jax.random.normal(kx, (B, N, in_c), dtype=jnp.float32)
    # Non-negative graph weights (no self-loops), strictly positive row sums.
    graph = jax.random.uniform(kg, (N, N), dtype=jnp.float32, minval=0.1, maxval=1.0)
    graph = graph * (1.0 - jnp.eye(N, dtype=jnp.float32))

    # xavier_normal_-style weight [K,1,in_c,out_c].
    fan_in = 1 * in_c * out_c
    fan_out = K * in_c * out_c
    std = (2.0 / (fan_in + fan_out)) ** 0.5
    weight = std * jax.random.normal(kw, (K, 1, in_c, out_c), dtype=jnp.float32)
    # The module initializes bias to zero; use a non-zero bias here so the
    # bias path is actually exercised.
    bias = 0.1 * jax.random.normal(kb, (1, 1, out_c), dtype=jnp.float32)

    ref = cheb_conv_reference(x, graph, weight, bias, normalize=True)

    # 1) Auto batch-group selection (single group at these tiny shapes).
    out = jax.block_until_ready(cheb_conv_forward(x, graph, weight, bias, normalize=True))
    assert out.shape == (B, N, out_c), out.shape
    assert jnp.allclose(out, ref, atol=1e-4, rtol=1e-4), \
        f"max err {jnp.max(jnp.abs(out - ref))}"

    # 2) Explicit batch-group tiling (grid of 2 'parallel' tiles).
    out2 = jax.block_until_ready(
        cheb_conv_forward(x, graph, weight, bias, normalize=True, batch_group_size=2))
    assert out2.shape == (B, N, out_c), out2.shape
    assert jnp.allclose(out2, ref, atol=1e-4, rtol=1e-4), \
        f"max err {jnp.max(jnp.abs(out2 - ref))}"

    print("KERNEL_OK")
</pallas_src>

<mosaic_0001>
module attributes {stable_mosaic.version = 11 : i64} {
  func.func @_cheb_conv_fused_kernel(%arg0: i32, %arg1: memref<16x16xf32, #tpu.memory_space<vmem>>, %arg2: memref<16x16xf32, #tpu.memory_space<vmem>>, %arg3: memref<32x64xf32, #tpu.memory_space<vmem>>, %arg4: memref<32x1xf32, #tpu.memory_space<vmem>>, %arg5: memref<32x16xf32, #tpu.memory_space<vmem>>) attributes {dimension_semantics = [#tpu.dimension_semantics<parallel>], iteration_bounds = array<i64: 1>, scalar_prefetch = 0 : i64, scratch_operands = 0 : i64, tpu.core_type = #tpu.core_type<tc>, window_params = [{pipeline_mode = #tpu.pipeline_mode<synchronous>, transform_indices = @transform_0, window_bounds = array<i64: 16, 16>}, {transform_indices = @transform_1, window_bounds = array<i64: 16, 16>}, {pipeline_mode = #tpu.pipeline_mode<synchronous>, transform_indices = @transform_2, window_bounds = array<i64: 32, 64>}, {pipeline_mode = #tpu.pipeline_mode<synchronous>, transform_indices = @transform_3, window_bounds = array<i64: 32, 1>}, {transform_indices = @transform_4, window_bounds = array<i64: 32, 16>}]} {
    %c0 = arith.constant 0 : index
    %c0_0 = arith.constant 0 : index
    %0 = vector.load %arg1[%c0, %c0_0] : memref<16x16xf32, #tpu.memory_space<vmem>>, vector<16x16xf32>
    %c0_1 = arith.constant 0 : index
    %c0_2 = arith.constant 0 : index
    %1 = vector.load %arg2[%c0_1, %c0_2] : memref<16x16xf32, #tpu.memory_space<vmem>>, vector<16x16xf32>
    %cst = arith.constant dense<0.000000e+00> : vector<16x16xf32>
    %2 = tpu.matmul %1, %0, %cst {dimension_numbers = #tpu.dot_dimension_numbers<[1], [0], [0], [1], [0, 0, 1, 1], [], []>, precision = #tpu.contract_precision<fp32>} : vector<16x16xf32>, vector<16x16xf32>, vector<16x16xf32> -> vector<16x16xf32>
    %cst_3 = arith.constant dense<0.000000e+00> : vector<16x16xf32>
    %3 = tpu.matmul %2, %0, %cst_3 {dimension_numbers = #tpu.dot_dimension_numbers<[1], [0], [0], [1], [0, 0, 1, 1], [], []>, precision = #tpu.contract_precision<fp32>} : vector<16x16xf32>, vector<16x16xf32>, vector<16x16xf32> -> vector<16x16xf32>
    %cst_4 = arith.constant 2.000000e+00 : f32
    %4 = vector.broadcast %cst_4 : f32 to vector<16x16xf32>
    %5 = arith.mulf %4, %3 : vector<16x16xf32>
    %6 = arith.subf %5, %1 : vector<16x16xf32>
    %cst_5 = arith.constant dense<0.000000e+00> : vector<16x16xf32>
    %7 = tpu.matmul %6, %0, %cst_5 {dimension_numbers = #tpu.dot_dimension_numbers<[1], [0], [0], [1], [0, 0, 1, 1], [], []>, precision = #tpu.contract_precision<fp32>} : vector<16x16xf32>, vector<16x16xf32>, vector<16x16xf32> -> vector<16x16xf32>
    %cst_6 = arith.constant 2.000000e+00 : f32
    %8 = vector.broadcast %cst_6 : f32 to vector<16x16xf32>
    %9 = arith.mulf %8, %7 : vector<16x16xf32>
    %10 = arith.subf %9, %2 : vector<16x16xf32>
    %11 = tpu.concatenate %1, %2, %6, %10 in 0 : vector<16x16xf32>, vector<16x16xf32>, vector<16x16xf32>, vector<16x16xf32> -> vector<64x16xf32>
    %c0_7 = arith.constant 0 : index
    %c0_8 = arith.constant 0 : index
    %12 = vector.load %arg3[%c0_7, %c0_8] : memref<32x64xf32, #tpu.memory_space<vmem>>, vector<32x64xf32>
    %cst_9 = arith.constant dense<0.000000e+00> : vector<32x16xf32>
    %13 = tpu.matmul %12, %11, %cst_9 {dimension_numbers = #tpu.dot_dimension_numbers<[1], [0], [0], [1], [0, 0, 1, 1], [], []>, precision = #tpu.contract_precision<fp32>} : vector<32x64xf32>, vector<64x16xf32>, vector<32x16xf32> -> vector<32x16xf32>
    %c0_10 = arith.constant 0 : index
    %c0_11 = arith.constant 0 : index
    %14 = vector.load %arg4[%c0_10, %c0_11] : memref<32x1xf32, #tpu.memory_space<vmem>>, vector<32x1xf32>
    %15 = vector.shape_cast %14 : vector<32x1xf32> to vector<32x1xf32>
    %16 = vector.broadcast %15 : vector<32x1xf32> to vector<32x16xf32>
    %17 = arith.addf %13, %16 : vector<32x16xf32>
    %c0_12 = arith.constant 0 : index
    %c0_13 = arith.constant 0 : index
    %18 = vector.load %arg5[%c0_12, %c0_13] : memref<32x16xf32, #tpu.memory_space<vmem>>, vector<32x16xf32>
    tpu.vector_store %arg5[%c0_12, %c0_13], %17 {strides = array<i32>} : memref<32x16xf32, #tpu.memory_space<vmem>>, vector<32x16xf32>,
    return
  }
  func.func @transform_0(%arg0: i32) -> (i32, i32) {
    %c0_i32 = arith.constant 0 : i32
    %c0_i32_0 = arith.constant 0 : i32
    %c0_i32_1 = arith.constant 0 : i32
    return %c0_i32, %c0_i32_0 : i32, i32
  }
  func.func @transform_1(%arg0: i32) -> (i32, i32) {
    %c0_i32 = arith.constant 0 : i32
    %c0_i32_0 = arith.constant 0 : i32
    return %arg0, %c0_i32 : i32, i32
  }
  func.func @transform_2(%arg0: i32) -> (i32, i32) {
    %c0_i32 = arith.constant 0 : i32
    %c0_i32_0 = arith.constant 0 : i32
    %c0_i32_1 = arith.constant 0 : i32
    return %c0_i32, %c0_i32_0 : i32, i32
  }
  func.func @transform_3(%arg0: i32) -> (i32, i32) {
    %c0_i32 = arith.constant 0 : i32
    %c0_i32_0 = arith.constant 0 : i32
    %c0_i32_1 = arith.constant 0 : i32
    return %c0_i32, %c0_i32_0 : i32, i32
  }
  func.func @transform_4(%arg0: i32) -> (i32, i32) {
    %c0_i32 = arith.constant 0 : i32
    %c0_i32_0 = arith.constant 0 : i32
    return %arg0, %c0_i32 : i32, i32
  }
}

</mosaic_0001>

<llo_original>
// kernel: tpu_custom_call.1
$region0: #{tpu_custom_call.1}
  #allocation0 [shape = 'u32[]', space=smem, size = 0x4, offset = 0x4, fixed_abs, tag = 'smem constant byte address 0x4 - core index']
  #allocation1 [shape = 'u32[144,128]{1,0:T(1,128)}', space=vmem, size = 0x12000, scoped, tag = 'internal scratch']
  %s0 = inlined_call_operand.hbm [shape: f32[16,16], index: 0, kind: input, shape index: {}]
  %s1 = inlined_call_operand.hbm [shape: f32[16,16], index: 1, kind: input, shape index: {}]
  %s2 = inlined_call_operand.vmem [shape: f32[32,64], index: 2, kind: input, shape index: {}]
  %s3 = inlined_call_operand.vmem [shape: f32[32,1], index: 3, kind: input, shape index: {}]
  %s4 = inlined_call_operand.vmem [shape: f32[32,16], index: 4, kind: output, shape index: {}]
  %s5 = sld [smem:[#allocation0]]
  $region34: #{tpu_custom_call.1} parent=0
    _
  %s7 = ssub.s32 1, %s5
  %s8 = scalar_select 0, %s7, %s5
  $region1: #{tpu_custom_call.1} parent=0
    #allocation2 [shape = 'u8[8192]{0}', space=vmem, size = 0x2000, scoped, tag = 'input window, operand 0, single buffered']
    #allocation3 [shape = 's32[1]{0}', space=sflag, size = 0x4, scoped, tag = 'scoped memory for tpu_custom_call.1']
    #allocation4 [shape = 'u8[8192]{0}', space=vmem, size = 0x2000, scoped, tag = 'input window, operand 1, single buffered']
    #allocation5 [shape = 's32[1]{0}', space=sflag, size = 0x4, scoped, tag = 'scoped memory for tpu_custom_call.1']
    %9 = vsyncpa [#allocation3], 0
    %10 = vsyncpa [#allocation5], 0
    // Predicated region
    $region2: #{tpu_custom_call.1} parent=1 // pred_check
      _
    $region3: #{tpu_custom_call.1} parent=1 // pred_check_branch
      %12 = sbr.rel (0) target = $region5
    $region4: #{tpu_custom_call.1} parent=1 // pred_region
      %s14 = ssub.s32 256, 256
      %15 = vsyncadd [#allocation3], %s14
      %s16 = sshll.u32 [#allocation2], 4
      %s17 = int_to_ptr.vmem [resolvable:$true] %s16
      %22 = dma.hbm_to_vmem [thread:$0]  %s0, 256, %s17, [#allocation3], 128, 128, 8
    $region5: #{tpu_custom_call.1} parent=1 // pred_fallthru
      _
    // Predicated region
    $region6: #{tpu_custom_call.1} parent=1 // pred_check
      _
    $region7: #{tpu_custom_call.1} parent=1 // pred_check_branch
      %24 = sbr.rel (0) target = $region9
    $region8: #{tpu_custom_call.1} parent=1 // pred_region
      %s26 = ssub.s32 256, 256
      %27 = vsyncadd [#allocation5], %s26
      %s28 = sshll.u32 [#allocation4], 4
      %s29 = int_to_ptr.vmem [resolvable:$true] %s28
      %34 = dma.hbm_to_vmem [thread:$0]  %s1, 256, %s29, [#allocation5], 128, 128, 8
    $region9: #{tpu_custom_call.1} parent=1 // pred_fallthru
      _
    // Predicated region
    $region10: #{tpu_custom_call.1} parent=1 // pred_check
      _
    $region11: #{tpu_custom_call.1} parent=1 // pred_check_branch
      %36 = sbr.rel (0) target = $region13
    $region12: #{tpu_custom_call.1} parent=1 // pred_region
      _
    $region13: #{tpu_custom_call.1} parent=1 // pred_fallthru
      _
    // Predicated region
    $region14: #{tpu_custom_call.1} parent=1 // pred_check
      _
    $region15: #{tpu_custom_call.1} parent=1 // pred_check_branch
      %38 = sbr.rel (0) target = $region17
    $region16: #{tpu_custom_call.1} parent=1 // pred_region
      _
    $region17: #{tpu_custom_call.1} parent=1 // pred_fallthru
      _
    // Predicated region
    $region18: #{tpu_custom_call.1} parent=1 // pred_check
      _
    $region19: #{tpu_custom_call.1} parent=1 // pred_check_branch
      %40 = sbr.rel (0) target = $region21
    $region20: #{tpu_custom_call.1} parent=1 // pred_region
      %41 = dma.done [#allocation3], 256
    $region21: #{tpu_custom_call.1} parent=1 // pred_fallthru
      _
    // Predicated region
    $region22: #{tpu_custom_call.1} parent=1 // pred_check
      _
    $region23: #{tpu_custom_call.1} parent=1 // pred_check_branch
      %43 = sbr.rel (0) target = $region25
    $region24: #{tpu_custom_call.1} parent=1 // pred_region
      %44 = dma.done [#allocation5], 256
    $region25: #{tpu_custom_call.1} parent=1 // pred_fallthru
      _
    %v45 = vld [vmem:[#allocation2] sm:$0xff]
    %v46 = vld [vmem:[#allocation2 + $0x8] sm:$0xff]
    %v47 = vld [vmem:[#allocation4] sm:$0xff]
    %v48 = vld [vmem:[#allocation4 + $0x8] sm:$0xff]
    %vm49 = vcmask 130048
    %v51 = vsel %vm49, %v47, 0
    %v54 = vsel %vm49, %v48, 0
    %56 = vmatprep.subr.mxu0 0.0
    %v57 = vand.u32 %v45, 4294901760
    %58 = vmatpush1.msra.mxu0 %v57
    %59 = vmatprep.subr.mxu0 0.0
    %v60 = vand.u32 %v46, 4294901760
    %61 = vmatpush1.msra.mxu0 %v60
    %62 = vmatprep.subr.mxu0 0.0
    %63 = vmatpush1.msra.mxu0 0.0
    %64 = vmatprep.subr.mxu0 0.0
    %65 = vmatpush1.msra.mxu0 0.0
    %66 = vmatprep.subr.mxu0 0.0
    %67 = vmatpush1.msra.mxu0 0.0
    %68 = vmatprep.subr.mxu0 0.0
    %69 = vmatpush1.msra.mxu0 0.0
    %70 = vmatprep.subr.mxu0 0.0
    %71 = vmatpush1.msra.mxu0 0.0
    %72 = vmatprep.subr.mxu0 0.0
    %73 = vmatpush1.msra.mxu0 0.0
    %74 = vmatprep.subr.mxu0 0.0
    %75 = vmatpush1.msra.mxu0 0.0
    %76 = vmatprep.subr.mxu0 0.0
    %77 = vmatpush1.msra.mxu0 0.0
    %78 = vmatprep.subr.mxu0 0.0
    %79 = vmatpush1.msra.mxu0 0.0
    %80 = vmatprep.subr.mxu0 0.0
    %81 = vmatpush1.msra.mxu0 0.0
    %82 = vmatprep.subr.mxu0 0.0
    %83 = vmatpush1.msra.mxu0 0.0
    %84 = vmatprep.subr.mxu0 0.0
    %85 = vmatpush1.msra.mxu0 0.0
    %86 = vmatprep.subr.mxu0 0.0
    %87 = vmatpush1.msra.mxu0 0.0
    %88 = vmatprep.subr.mxu0 0.0
    %89 = vmatpush1.msra.mxu0 0.0
    %90 = vmatprep.subr.mxu0 0.0
    %91 = vmatpush1.msra.mxu0 0.0
    %92 = vmatprep.subr.mxu0 0.0
    %93 = vmatpush1.msra.mxu0 0.0
    %94 = vmatprep.subr.mxu0 0.0
    %95 = vmatpush1.msra.mxu0 0.0
    %96 = vmatprep.subr.mxu0 0.0
    %97 = vmatpush1.msra.mxu0 0.0
    %98 = vmatprep.subr.mxu0 0.0
    %99 = vmatpush1.msra.mxu0 0.0
    %100 = vmatprep.subr.mxu0 0.0
    %101 = vmatpush1.msra.mxu0 0.0
    %102 = vmatprep.subr.mxu0 0.0
    %103 = vmatpush1.msra.mxu0 0.0
    %104 = vmatprep.subr.mxu0 0.0
    %105 = vmatpush1.msra.mxu0 0.0
    %106 = vmatprep.subr.mxu0 0.0
    %107 = vmatpush1.msra.mxu0 0.0
    %108 = vmatprep.subr.mxu0 0.0
    %109 = vmatpush1.msra.mxu0 0.0
    %110 = vmatprep.subr.mxu0 0.0
    %111 = vmatpush1.msra.mxu0 0.0
    %112 = vmatprep.subr.mxu0 0.0
    %113 = vmatpush1.msra.mxu0 0.0
    %114 = vmatprep.subr.mxu0 0.0
    %115 = vmatpush1.msra.mxu0 0.0
    %116 = vmatprep.subr.mxu0 0.0
    %117 = vmatpush1.msra.mxu0 0.0
    %118 = vmatprep.subr.mxu0 0.0
    %119 = vmatpush1.msra.mxu0 0.0
    %120 = vmatprep.subr.mxu0 0.0
    %121 = vmatpush1.msra.mxu0 0.0
    %122 = vmatprep.mubr.f32.mxu0 0.0
    %v123 = vand.u32 %v51, 4294901760
    %v124 = vsub.f32 %v51, %v123
    %v125 = vand.u32 %v124, 4294901760
    %v126 = vsub.f32 %v124, %v125
    %v127 = vand.u32 %v126, 4294901760
    %128 = vmatmul.mubr.f32.gmra.mrb[0].mxu0 %v127
    %v129 = vpop.f32.mrb[0].mxu0
    %v130 = vadd.f32 0.0, %v129
    %v131 = vpop.f32.mrb[0].mxu0
    %132 = vmatprep.mubr.f32.mxu0 0.0
    %v133 = vand.u32 %v54, 4294901760
    %v134 = vsub.f32 %v54, %v133
    %v135 = vand.u32 %v134, 4294901760
    %v136 = vsub.f32 %v134, %v135
    %v137 = vand.u32 %v136, 4294901760
    %138 = vmatmul.mubr.f32.gmra.mrb[0].mxu0 %v137
    %v139 = vpop.f32.mrb[0].mxu0
    %v140 = vadd.f32 0.0, %v139
    %v141 = vpop.f32.mrb[0].mxu0
    %142 = vdwg.mxu0
    %143 = vmatprep.subr.mxu0 0.0
    %v144 = vand.u32 %v45, 4294901760
    %v145 = vsub.f32 %v45, %v144
    %v146 = vand.u32 %v145, 4294901760
    %v147 = vsub.f32 %v145, %v146
    %v148 = vand.u32 %v147, 4294901760
    %149 = vmatpush1.msra.mxu0 %v148
    %150 = vmatprep.subr.mxu0 0.0
    %v151 = vand.u32 %v46, 4294901760
    %v152 = vsub.f32 %v46, %v151
    %v153 = vand.u32 %v152, 4294901760
    %v154 = vsub.f32 %v152, %v153
    %v155 = vand.u32 %v154, 4294901760
    %156 = vmatpush1.msra.mxu0 %v155
    %157 = vmatprep.subr.mxu0 0.0
    %158 = vmatpush1.msra.mxu0 0.0
    %159 = vmatprep.subr.mxu0 0.0
    %160 = vmatpush1.msra.mxu0 0.0
    %161 = vmatprep.subr.mxu0 0.0
    %162 = vmatpush1.msra.mxu0 0.0
    %163 = vmatprep.subr.mxu0 0.0
    %164 = vmatpush1.msra.mxu0 0.0
    %165 = vmatprep.subr.mxu0 0.0
    %166 = vmatpush1.msra.mxu0 0.0
    %167 = vmatprep.subr.mxu0 0.0
    %168 = vmatpush1.msra.mxu0 0.0
    %169 = vmatprep.subr.mxu0 0.0
    %170 = vmatpush1.msra.mxu0 0.0
    %171 = vmatprep.subr.mxu0 0.0
    %172 = vmatpush1.msra.mxu0 0.0
    %173 = vmatprep.subr.mxu0 0.0
    %174 = vmatpush1.msra.mxu0 0.0
    %175 = vmatprep.subr.mxu0 0.0
    %176 = vmatpush1.msra.mxu0 0.0
    %177 = vmatprep.subr.mxu0 0.0
    %178 = vmatpush1.msra.mxu0 0.0
    %179 = vmatprep.subr.mxu0 0.0
    %180 = vmatpush1.msra.mxu0 0.0
    %181 = vmatprep.subr.mxu0 0.0
    %182 = vmatpush1.msra.mxu0 0.0
    %183 = vmatprep.subr.mxu0 0.0
    %184 = vmatpush1.msra.mxu0 0.0
    %185 = vmatprep.subr.mxu0 0.0
    %186 = vmatpush1.msra.mxu0 0.0
    %187 = vmatprep.subr.mxu0 0.0
    %188 = vmatpush1.msra.mxu0 0.0
    %189 = vmatprep.subr.mxu0 0.0
    %190 = vmatpush1.msra.mxu0 0.0
    %191 = vmatprep.subr.mxu0 0.0
    %192 = vmatpush1.msra.mxu0 0.0
    %193 = vmatprep.subr.mxu0 0.0
    %194 = vmatpush1.msra.mxu0 0.0
    %195 = vmatprep.subr.mxu0 0.0
    %196 = vmatpush1.msra.mxu0 0.0
    %197 = vmatprep.subr.mxu0 0.0
    %198 = vmatpush1.msra.mxu0 0.0
    %199 = vmatprep.subr.mxu0 0.0
    %200 = vmatpush1.msra.mxu0 0.0
    %201 = vmatprep.subr.mxu0 0.0
    %202 = vmatpush1.msra.mxu0 0.0
    %203 = vmatprep.subr.mxu0 0.0
    %204 = vmatpush1.msra.mxu0 0.0
    %205 = vmatprep.subr.mxu0 0.0
    %206 = vmatpush1.msra.mxu0 0.0
    %207 = vmatprep.subr.mxu0 0.0
    %208 = vmatpush1.msra.mxu0 0.0
    %209 = vmatprep.subr.mxu0 0.0
    %210 = vmatpush1.msra.mxu0 0.0
    %211 = vmatprep.subr.mxu0 0.0
    %212 = vmatpush1.msra.mxu0 0.0
    %213 = vmatprep.subr.mxu0 0.0
    %214 = vmatpush1.msra.mxu0 0.0
    %215 = vmatprep.subr.mxu0 0.0
    %216 = vmatpush1.msra.mxu0 0.0
    %217 = vmatprep.mubr.f32.mxu0 0.0
    %v218 = vand.u32 %v51, 4294901760
    %219 = vmatmul.mubr.f32.gmra.mrb[0].mxu0 %v218
    %v220 = vpop.f32.mrb[0].mxu0
    %v221 = vadd.f32 %v130, %v220
    %v222 = vpop.f32.mrb[0].mxu0
    %223 = vmatprep.mubr.f32.mxu0 0.0
    %v224 = vand.u32 %v54, 4294901760
    %225 = vmatmul.mubr.f32.gmra.mrb[0].mxu0 %v224
    %v226 = vpop.f32.mrb[0].mxu0
    %v227 = vadd.f32 %v140, %v226
    %v228 = vpop.f32.mrb[0].mxu0
    %229 = vdwg.mxu0
    %230 = vmatprep.subr.mxu0 0.0
    %v231 = vand.u32 %v45, 4294901760
    %v232 = vsub.f32 %v45, %v231
    %233 = vmatpush1.msra.mxu0 %v232
    %234 = vmatprep.subr.mxu0 0.0
    %v235 = vand.u32 %v46, 4294901760
    %v236 = vsub.f32 %v46, %v235
    %237 = vmatpush1.msra.mxu0 %v236
    %238 = vmatprep.subr.mxu0 0.0
    %239 = vmatpush1.msra.mxu0 0.0
    %240 = vmatprep.subr.mxu0 0.0
    %241 = vmatpush1.msra.mxu0 0.0
    %242 = vmatprep.subr.mxu0 0.0
    %243 = vmatpush1.msra.mxu0 0.0
    %244 = vmatprep.subr.mxu0 0.0
    %245 = vmatpush1.msra.mxu0 0.0
    %246 = vmatprep.subr.mxu0 0.0
    %247 = vmatpush1.msra.mxu0 0.0
    %248 = vmatprep.subr.mxu0 0.0
    %249 = vmatpush1.msra.mxu0 0.0
    %250 = vmatprep.subr.mxu0 0.0
    %251 = vmatpush1.msra.mxu0 0.0
    %252 = vmatprep.subr.mxu0 0.0
    %253 = vmatpush1.msra.mxu0 0.0
    %254 = vmatprep.subr.mxu0 0.0
    %255 = vmatpush1.msra.mxu0 0.0
    %256 = vmatprep.subr.mxu0 0.0
    %257 = vmatpush1.msra.mxu0 0.0
    %258 = vmatprep.subr.mxu0 0.0
    %259 = vmatpush1.msra.mxu0 0.0
    %260 = vmatprep.subr.mxu0 0.0
    %261 = vmatpush1.msra.mxu0 0.0
    %262 = vmatprep.subr.mxu0 0.0
    %263 = vmatpush1.msra.mxu0 0.0
    %264 = vmatprep.subr.mxu0 0.0
    %265 = vmatpush1.msra.mxu0 0.0
    %266 = vmatprep.subr.mxu0 0.0
    %267 = vmatpush1.msra.mxu0 0.0
    %268 = vmatprep.subr.mxu0 0.0
    %269 = vmatpush1.msra.mxu0 0.0
    %270 = vmatprep.subr.mxu0 0.0
    %271 = vmatpush1.msra.mxu0 0.0
    %272 = vmatprep.subr.mxu0 0.0
    %273 = vmatpush1.msra.mxu0 0.0
    %274 = vmatprep.subr.mxu0 0.0
    %275 = vmatpush1.msra.mxu0 0.0
    %276 = vmatprep.subr.mxu0 0.0
    %277 = vmatpush1.msra.mxu0 0.0
    %278 = vmatprep.subr.mxu0 0.0
    %279 = vmatpush1.msra.mxu0 0.0
    %280 = vmatprep.subr.mxu0 0.0
    %281 = vmatpush1.msra.mxu0 0.0
    %282 = vmatprep.subr.mxu0 0.0
    %283 = vmatpush1.msra.mxu0 0.0
    %284 = vmatprep.subr.mxu0 0.0
    %285 = vmatpush1.msra.mxu0 0.0
    %286 = vmatprep.subr.mxu0 0.0
    %287 = vmatpush1.msra.mxu0 0.0
    %288 = vmatprep.subr.mxu0 0.0
    %289 = vmatpush1.msra.mxu0 0.0
    %290 = vmatprep.subr.mxu0 0.0
    %291 = vmatpush1.msra.mxu0 0.0
    %292 = vmatprep.subr.mxu0 0.0
    %293 = vmatpush1.msra.mxu0 0.0
    %294 = vmatprep.subr.mxu0 0.0
    %295 = vmatpush1.msra.mxu0 0.0
    %296 = vmatprep.subr.mxu0 0.0
    %297 = vmatpush1.msra.mxu0 0.0
    %298 = vmatprep.mubr.f32.mxu0 0.0
    %v299 = vand.u32 %v51, 4294901760
    %v300 = vsub.f32 %v51, %v299
    %301 = vmatmul.mubr.f32.gmra.mrb[0].mxu0 %v300
    %v302 = vpop.f32.mrb[0].mxu0
    %v303 = vadd.f32 %v221, %v302
    %v304 = vpop.f32.mrb[0].mxu0
    %305 = vmatprep.mubr.f32.mxu0 0.0
    %v306 = vand.u32 %v54, 4294901760
    %v307 = vsub.f32 %v54, %v306
    %308 = vmatmul.mubr.f32.gmra.mrb[0].mxu0 %v307
    %v309 = vpop.f32.mrb[0].mxu0
    %v310 = vadd.f32 %v227, %v309
    %v311 = vpop.f32.mrb[0].mxu0
    %312 = vdwg.mxu0
    %313 = vmatprep.subr.mxu0 0.0
    %v314 = vand.u32 %v45, 4294901760
    %315 = vmatpush1.msra.mxu0 %v314
    %316 = vmatprep.subr.mxu0 0.0
    %v317 = vand.u32 %v46, 4294901760
    %318 = vmatpush1.msra.mxu0 %v317
    %319 = vmatprep.subr.mxu0 0.0
    %320 = vmatpush1.msra.mxu0 0.0
    %321 = vmatprep.subr.mxu0 0.0
    %322 = vmatpush1.msra.mxu0 0.0
    %323 = vmatprep.subr.mxu0 0.0
    %324 = vmatpush1.msra.mxu0 0.0
    %325 = vmatprep.subr.mxu0 0.0
    %326 = vmatpush1.msra.mxu0 0.0
    %327 = vmatprep.subr.mxu0 0.0
    %328 = vmatpush1.msra.mxu0 0.0
    %329 = vmatprep.subr.mxu0 0.0
    %330 = vmatpush1.msra.mxu0 0.0
    %331 = vmatprep.subr.mxu0 0.0
    %332 = vmatpush1.msra.mxu0 0.0
    %333 = vmatprep.subr.mxu0 0.0
    %334 = vmatpush1.msra.mxu0 0.0
    %335 = vmatprep.subr.mxu0 0.0
    %336 = vmatpush1.msra.mxu0 0.0
    %337 = vmatprep.subr.mxu0 0.0
    %338 = vmatpush1.msra.mxu0 0.0
    %339 = vmatprep.subr.mxu0 0.0
    %340 = vmatpush1.msra.mxu0 0.0
    %341 = vmatprep.subr.mxu0 0.0
    %342 = vmatpush1.msra.mxu0 0.0
    %343 = vmatprep.subr.mxu0 0.0
    %344 = vmatpush1.msra.mxu0 0.0
    %345 = vmatprep.subr.mxu0 0.0
    %346 = vmatpush1.msra.mxu0 0.0
    %347 = vmatprep.subr.mxu0 0.0
    %348 = vmatpush1.msra.mxu0 0.0
    %349 = vmatprep.subr.mxu0 0.0
    %350 = vmatpush1.msra.mxu0 0.0
    %351 = vmatprep.subr.mxu0 0.0
    %352 = vmatpush1.msra.mxu0 0.0
    %353 = vmatprep.subr.mxu0 0.0
    %354 = vmatpush1.msra.mxu0 0.0
    %355 = vmatprep.subr.mxu0 0.0
    %356 = vmatpush1.msra.mxu0 0.0
    %357 = vmatprep.subr.mxu0 0.0
    %358 = vmatpush1.msra.mxu0 0.0
    %359 = vmatprep.subr.mxu0 0.0
    %360 = vmatpush1.msra.mxu0 0.0
    %361 = vmatprep.subr.mxu0 0.0
    %362 = vmatpush1.msra.mxu0 0.0
    %363 = vmatprep.subr.mxu0 0.0
    %364 = vmatpush1.msra.mxu0 0.0
    %365 = vmatprep.subr.mxu0 0.0
    %366 = vmatpush1.msra.mxu0 0.0
    %367 = vmatprep.subr.mxu0 0.0
    %368 = vmatpush1.msra.mxu0 0.0
    %369 = vmatprep.subr.mxu0 0.0
    %370 = vmatpush1.msra.mxu0 0.0
    %371 = vmatprep.subr.mxu0 0.0
    %372 = vmatpush1.msra.mxu0 0.0
    %373 = vmatprep.subr.mxu0 0.0
    %374 = vmatpush1.msra.mxu0 0.0
    %375 = vmatprep.subr.mxu0 0.0
    %376 = vmatpush1.msra.mxu0 0.0
    %377 = vmatprep.subr.mxu0 0.0
    %378 = vmatpush1.msra.mxu0 0.0
    %379 = vmatprep.mubr.f32.mxu0 0.0
    %v380 = vand.u32 %v51, 4294901760
    %v381 = vsub.f32 %v51, %v380
    %v382 = vand.u32 %v381, 4294901760
    %383 = vmatmul.mubr.f32.gmra.mrb[0].mxu0 %v382
    %v384 = vpop.f32.mrb[0].mxu0
    %v385 = vadd.f32 %v303, %v384
    %v386 = vpop.f32.mrb[0].mxu0
    %387 = vmatprep.mubr.f32.mxu0 0.0
    %v388 = vand.u32 %v54, 4294901760
    %v389 = vsub.f32 %v54, %v388
    %v390 = vand.u32 %v389, 4294901760
    %391 = vmatmul.mubr.f32.gmra.mrb[0].mxu0 %v390
    %v392 = vpop.f32.mrb[0].mxu0
    %v393 = vadd.f32 %v310, %v392
    %v394 = vpop.f32.mrb[0].mxu0
    %395 = vdwg.mxu0
    %396 = vmatprep.subr.mxu0 0.0
    %v397 = vand.u32 %v45, 4294901760
    %v398 = vsub.f32 %v45, %v397
    %v399 = vand.u32 %v398, 4294901760
    %400 = vmatpush1.msra.mxu0 %v399
    %401 = vmatprep.subr.mxu0 0.0
    %v402 = vand.u32 %v46, 4294901760
    %v403 = vsub.f32 %v46, %v402
    %v404 = vand.u32 %v403, 4294901760
    %405 = vmatpush1.msra.mxu0 %v404
    %406 = vmatprep.subr.mxu0 0.0
    %407 = vmatpush1.msra.mxu0 0.0
    %408 = vmatprep.subr.mxu0 0.0
    %409 = vmatpush1.msra.mxu0 0.0
    %410 = vmatprep.subr.mxu0 0.0
    %411 = vmatpush1.msra.mxu0 0.0
    %412 = vmatprep.subr.mxu0 0.0
    %413 = vmatpush1.msra.mxu0 0.0
    %414 = vmatprep.subr.mxu0 0.0
    %415 = vmatpush1.msra.mxu0 0.0
    %416 = vmatprep.subr.mxu0 0.0
    %417 = vmatpush1.msra.mxu0 0.0
    %418 = vmatprep.subr.mxu0 0.0
    %419 = vmatpush1.msra.mxu0 0.0
    %420 = vmatprep.subr.mxu0 0.0
    %421 = vmatpush1.msra.mxu0 0.0
    %422 = vmatprep.subr.mxu0 0.0
    %423 = vmatpush1.msra.mxu0 0.0
    %424 = vmatprep.subr.mxu0 0.0
    %425 = vmatpush1.msra.mxu0 0.0
    %426 = vmatprep.subr.mxu0 0.0
    %427 = vmatpush1.msra.mxu0 0.0
    %428 = vmatprep.subr.mxu0 0.0
    %429 = vmatpush1.msra.mxu0 0.0
    %430 = vmatprep.subr.mxu0 0.0
    %431 = vmatpush1.msra.mxu0 0.0
    %432 = vmatprep.subr.mxu0 0.0
    %433 = vmatpush1.msra.mxu0 0.0
    %434 = vmatprep.subr.mxu0 0.0
    %435 = vmatpush1.msra.mxu0 0.0
    %436 = vmatprep.subr.mxu0 0.0
    %437 = vmatpush1.msra.mxu0 0.0
    %438 = vmatprep.subr.mxu0 0.0
    %439 = vmatpush1.msra.mxu0 0.0
    %440 = vmatprep.subr.mxu0 0.0
    %441 = vmatpush1.msra.mxu0 0.0
    %442 = vmatprep.subr.mxu0 0.0
    %443 = vmatpush1.msra.mxu0 0.0
    %444 = vmatprep.subr.mxu0 0.0
    %445 = vmatpush1.msra.mxu0 0.0
    %446 = vmatprep.subr.mxu0 0.0
    %447 = vmatpush1.msra.mxu0 0.0
    %448 = vmatprep.subr.mxu0 0.0
    %449 = vmatpush1.msra.mxu0 0.0
    %450 = vmatprep.subr.mxu0 0.0
    %451 = vmatpush1.msra.mxu0 0.0
    %452 = vmatprep.subr.mxu0 0.0
    %453 = vmatpush1.msra.mxu0 0.0
    %454 = vmatprep.subr.mxu0 0.0
    %455 = vmatpush1.msra.mxu0 0.0
    %456 = vmatprep.subr.mxu0 0.0
    %457 = vmatpush1.msra.mxu0 0.0
    %458 = vmatprep.subr.mxu0 0.0
    %459 = vmatpush1.msra.mxu0 0.0
    %460 = vmatprep.subr.mxu0 0.0
    %461 = vmatpush1.msra.mxu0 0.0
    %462 = vmatprep.subr.mxu0 0.0
    %463 = vmatpush1.msra.mxu0 0.0
    %464 = vmatprep.subr.mxu0 0.0
    %465 = vmatpush1.msra.mxu0 0.0
    %466 = vmatprep.mubr.f32.mxu0 0.0
    %v467 = vand.u32 %v51, 4294901760
    %468 = vmatmul.mubr.f32.gmra.mrb[0].mxu0 %v467
    %v469 = vpop.f32.mrb[0].mxu0
    %v470 = vadd.f32 %v385, %v469
    %v471 = vpop.f32.mrb[0].mxu0
    %472 = vmatprep.mubr.f32.mxu0 0.0
    %v473 = vand.u32 %v54, 4294901760
    %474 = vmatmul.mubr.f32.gmra.mrb[0].mxu0 %v473
    %v475 = vpop.f32.mrb[0].mxu0
    %v476 = vadd.f32 %v393, %v475
    %v477 = vpop.f32.mrb[0].mxu0
    %478 = vdwg.mxu0
    %479 = vmatprep.subr.mxu0 0.0
    %v480 = vand.u32 %v45, 4294901760
    %481 = vmatpush1.msra.mxu0 %v480
    %482 = vmatprep.subr.mxu0 0.0
    %v483 = vand.u32 %v46, 4294901760
    %484 = vmatpush1.msra.mxu0 %v483
    %485 = vmatprep.subr.mxu0 0.0
    %486 = vmatpush1.msra.mxu0 0.0
    %487 = vmatprep.subr.mxu0 0.0
    %488 = vmatpush1.msra.mxu0 0.0
    %489 = vmatprep.subr.mxu0 0.0
    %490 = vmatpush1.msra.mxu0 0.0
    %491 = vmatprep.subr.mxu0 0.0
    %492 = vmatpush1.msra.mxu0 0.0
    %493 = vmatprep.subr.mxu0 0.0
    %494 = vmatpush1.msra.mxu0 0.0
    %495 = vmatprep.subr.mxu0 0.0
    %496 = vmatpush1.msra.mxu0 0.0
    %497 = vmatprep.subr.mxu0 0.0
    %498 = vmatpush1.msra.mxu0 0.0
    %499 = vmatprep.subr.mxu0 0.0
    %500 = vmatpush1.msra.mxu0 0.0
    %501 = vmatprep.subr.mxu0 0.0
    %502 = vmatpush1.msra.mxu0 0.0
    %503 = vmatprep.subr.mxu0 0.0
    %504 = vmatpush1.msra.mxu0 0.0
    %505 = vmatprep.subr.mxu0 0.0
    %506 = vmatpush1.msra.mxu0 0.0
    %507 = vmatprep.subr.mxu0 0.0
    %508 = vmatpush1.msra.mxu0 0.0
    %509 = vmatprep.subr.mxu0 0.0
    %510 = vmatpush1.msra.mxu0 0.0
    %511 = vmatprep.subr.mxu0 0.0
    %512 = vmatpush1.msra.mxu0 0.0
    %513 = vmatprep.subr.mxu0 0.0
    %514 = vmatpush1.msra.mxu0 0.0
    %515 = vmatprep.subr.mxu0 0.0
    %516 = vmatpush1.msra.mxu0 0.0
    %517 = vmatprep.subr.mxu0 0.0
    %518 = vmatpush1.msra.mxu0 0.0
    %519 = vmatprep.subr.mxu0 0.0
    %520 = vmatpush1.msra.mxu0 0.0
    %521 = vmatprep.subr.mxu0 0.0
    %522 = vmatpush1.msra.mxu0 0.0
    %523 = vmatprep.subr.mxu0 0.0
    %524 = vmatpush1.msra.mxu0 0.0
    %525 = vmatprep.subr.mxu0 0.0
    %526 = vmatpush1.msra.mxu0 0.0
    %527 = vmatprep.subr.mxu0 0.0
    %528 = vmatpush1.msra.mxu0 0.0
    %529 = vmatprep.subr.mxu0 0.0
    %530 = vmatpush1.msra.mxu0 0.0
    %531 = vmatprep.subr.mxu0 0.0
    %532 = vmatpush1.msra.mxu0 0.0
    %533 = vmatprep.subr.mxu0 0.0
    %534 = vmatpush1.msra.mxu0 0.0
    %535 = vmatprep.subr.mxu0 0.0
    %536 = vmatpush1.msra.mxu0 0.0
    %537 = vmatprep.subr.mxu0 0.0
    %538 = vmatpush1.msra.mxu0 0.0
    %539 = vmatprep.subr.mxu0 0.0
    %540 = vmatpush1.msra.mxu0 0.0
    %541 = vmatprep.subr.mxu0 0.0
    %542 = vmatpush1.msra.mxu0 0.0
    %543 = vmatprep.subr.mxu0 0.0
    %544 = vmatpush1.msra.mxu0 0.0
    %545 = vmatprep.mubr.f32.mxu0 0.0
    %v546 = vand.u32 %v51, 4294901760
    %547 = vmatmul.mubr.f32.gmra.mrb[0].mxu0 %v546
    %v548 = vpop.f32.mrb[0].mxu0
    %v549 = vadd.f32 %v470, %v548
    %v550 = vpop.f32.mrb[0].mxu0
    %551 = vmatprep.mubr.f32.mxu0 0.0
    %v552 = vand.u32 %v54, 4294901760
    %553 = vmatmul.mubr.f32.gmra.mrb[0].mxu0 %v552
    %v554 = vpop.f32.mrb[0].mxu0
    %v555 = vadd.f32 %v476, %v554
    %v556 = vpop.f32.mrb[0].mxu0
    %557 = vdwg.mxu0
    %v559 = vsel %vm49, %v549, 0
    %v562 = vsel %vm49, %v555, 0
    %564 = vmatprep.subr.mxu0 0.0
    %v565 = vand.u32 %v45, 4294901760
    %566 = vmatpush1.msra.mxu0 %v565
    %567 = vmatprep.subr.mxu0 0.0
    %v568 = vand.u32 %v46, 4294901760
    %569 = vmatpush1.msra.mxu0 %v568
    %570 = vmatprep.subr.mxu0 0.0
    %571 = vmatpush1.msra.mxu0 0.0
    %572 = vmatprep.subr.mxu0 0.0
    %573 = vmatpush1.msra.mxu0 0.0
    %574 = vmatprep.subr.mxu0 0.0
    %575 = vmatpush1.msra.mxu0 0.0
    %576 = vmatprep.subr.mxu0 0.0
    %577 = vmatpush1.msra.mxu0 0.0
    %578 = vmatprep.subr.mxu0 0.0
    %579 = vmatpush1.msra.mxu0 0.0
    %580 = vmatprep.subr.mxu0 0.0
    %581 = vmatpush1.msra.mxu0 0.0
    %582 = vmatprep.subr.mxu0 0.0
    %583 = vmatpush1.msra.mxu0 0.0
    %584 = vmatprep.subr.mxu0 0.0
    %585 = vmatpush1.msra.mxu0 0.0
    %586 = vmatprep.subr.mxu0 0.0
    %587 = vmatpush1.msra.mxu0 0.0
    %588 = vmatprep.subr.mxu0 0.0
    %589 = vmatpush1.msra.mxu0 0.0
    %590 = vmatprep.subr.mxu0 0.0
    %591 = vmatpush1.msra.mxu0 0.0
    %592 = vmatprep.subr.mxu0 0.0
    %593 = vmatpush1.msra.mxu0 0.0
    %594 = vmatprep.subr.mxu0 0.0
    %595 = vmatpush1.msra.mxu0 0.0
    %596 = vmatprep.subr.mxu0 0.0
    %597 = vmatpush1.msra.mxu0 0.0
    %598 = vmatprep.subr.mxu0 0.0
    %599 = vmatpush1.msra.mxu0 0.0
    %600 = vmatprep.subr.mxu0 0.0
    %601 = vmatpush1.msra.mxu0 0.0
    %602 = vmatprep.subr.mxu0 0.0
    %603 = vmatpush1.msra.mxu0 0.0
    %604 = vmatprep.subr.mxu0 0.0
    %605 = vmatpush1.msra.mxu0 0.0
    %606 = vmatprep.subr.mxu0 0.0
    %607 = vmatpush1.msra.mxu0 0.0
    %608 = vmatprep.subr.mxu0 0.0
    %609 = vmatpush1.msra.mxu0 0.0
    %610 = vmatprep.subr.mxu0 0.0
    %611 = vmatpush1.msra.mxu0 0.0
    %612 = vmatprep.subr.mxu0 0.0
    %613 = vmatpush1.msra.mxu0 0.0
    %614 = vmatprep.subr.mxu0 0.0
    %615 = vmatpush1.msra.mxu0 0.0
    %616 = vmatprep.subr.mxu0 0.0
    %617 = vmatpush1.msra.mxu0 0.0
    %618 = vmatprep.subr.mxu0 0.0
    %619 = vmatpush1.msra.mxu0 0.0
    %620 = vmatprep.subr.mxu0 0.0
    %621 = vmatpush1.msra.mxu0 0.0
    %622 = vmatprep.subr.mxu0 0.0
    %623 = vmatpush1.msra.mxu0 0.0
    %624 = vmatprep.subr.mxu0 0.0
    %625 = vmatpush1.msra.mxu0 0.0
    %626 = vmatprep.subr.mxu0 0.0
    %627 = vmatpush1.msra.mxu0 0.0
    %628 = vmatprep.subr.mxu0 0.0
    %629 = vmatpush1.msra.mxu0 0.0
    %630 = vmatprep.mubr.f32.mxu0 0.0
    %v631 = vand.u32 %v559, 4294901760
    %v632 = vsub.f32 %v559, %v631
    %v633 = vand.u32 %v632, 4294901760
    %v634 = vsub.f32 %v632, %v633
    %v635 = vand.u32 %v634, 4294901760
    %636 = vmatmul.mubr.f32.gmra.mrb[0].mxu0 %v635
    %v637 = vpop.f32.mrb[0].mxu0
    %v638 = vadd.f32 0.0, %v637
    %v639 = vpop.f32.mrb[0].mxu0
    %640 = vmatprep.mubr.f32.mxu0 0.0
    %v641 = vand.u32 %v562, 4294901760
    %v642 = vsub.f32 %v562, %v641
    %v643 = vand.u32 %v642, 4294901760
    %v644 = vsub.f32 %v642, %v643
    %v645 = vand.u32 %v644, 4294901760
    %646 = vmatmul.mubr.f32.gmra.mrb[0].mxu0 %v645
    %v647 = vpop.f32.mrb[0].mxu0
    %v648 = vadd.f32 0.0, %v647
    %v649 = vpop.f32.mrb[0].mxu0
    %650 = vdwg.mxu0
    %651 = vmatprep.subr.mxu0 0.0
    %v652 = vand.u32 %v45, 4294901760
    %v653 = vsub.f32 %v45, %v652
    %v654 = vand.u32 %v653, 4294901760
    %v655 = vsub.f32 %v653, %v654
    %v656 = vand.u32 %v655, 4294901760
    %657 = vmatpush1.msra.mxu0 %v656
    %658 = vmatprep.subr.mxu0 0.0
    %v659 = vand.u32 %v46, 4294901760
    %v660 = vsub.f32 %v46, %v659
    %v661 = vand.u32 %v660, 4294901760
    %v662 = vsub.f32 %v660, %v661
    %v663 = vand.u32 %v662, 4294901760
    %664 = vmatpush1.msra.mxu0 %v663
    %665 = vmatprep.subr.mxu0 0.0
    %666 = vmatpush1.msra.mxu0 0.0
    %667 = vmatprep.subr.mxu0 0.0
    %668 = vmatpush1.msra.mxu0 0.0
    %669 = vmatprep.subr.mxu0 0.0
    %670 = vmatpush1.msra.mxu0 0.0
    %671 = vmatprep.subr.mxu0 0.0
    %672 = vmatpush1.msra.mxu0 0.0
    %673 = vmatprep.subr.mxu0 0.0
    %674 = vmatpush1.msra.mxu0 0.0
    %675 = vmatprep.subr.mxu0 0.0
    %676 = vmatpush1.msra.mxu0 0.0
    %677 = vmatprep.subr.mxu0 0.0
    %678 = vmatpush1.msra.mxu0 0.0
    %679 = vmatprep.subr.mxu0 0.0
    %680 = vmatpush1.msra.mxu0 0.0
    %681 = vmatprep.subr.mxu0 0.0
    %682 = vmatpush1.msra.mxu0 0.0
    %683 = vmatprep.subr.mxu0 0.0
    %684 = vmatpush1.msra.mxu0 0.0
    %685 = vmatprep.subr.mxu0 0.0
    %686 = vmatpush1.msra.mxu0 0.0
    %687 = vmatprep.subr.mxu0 0.0
    %688 = vmatpush1.msra.mxu0 0.0
    %689 = vmatprep.subr.mxu0 0.0
    %690 = vmatpush1.msra.mxu0 0.0
    %691 = vmatprep.subr.mxu0 0.0
    %692 = vmatpush1.msra.mxu0 0.0
    %693 = vmatprep.subr.mxu0 0.0
    %694 = vmatpush1.msra.mxu0 0.0
    %695 = vmatprep.subr.mxu0 0.0
    %696 = vmatpush1.msra.mxu0 0.0
    %697 = vmatprep.subr.mxu0 0.0
    %698 = vmatpush1.msra.mxu0 0.0
    %699 = vmatprep.subr.mxu0 0.0
    %700 = vmatpush1.msra.mxu0 0.0
    %701 = vmatprep.subr.mxu0 0.0
    %702 = vmatpush1.msra.mxu0 0.0
    %703 = vmatprep.subr.mxu0 0.0
    %704 = vmatpush1.msra.mxu0 0.0
    %705 = vmatprep.subr.mxu0 0.0
    %706 = vmatpush1.msra.mxu0 0.0
    %707 = vmatprep.subr.mxu0 0.0
    %708 = vmatpush1.msra.mxu0 0.0
    %709 = vmatprep.subr.mxu0 0.0
    %710 = vmatpush1.msra.mxu0 0.0
    %711 = vmatprep.subr.mxu0 0.0
    %712 = vmatpush1.msra.mxu0 0.0
    %713 = vmatprep.subr.mxu0 0.0
    %714 = vmatpush1.msra.mxu0 0.0
    %715 = vmatprep.subr.mxu0 0.0
    %716 = vmatpush1.msra.mxu0 0.0
    %717 = vmatprep.subr.mxu0 0.0
    %718 = vmatpush1.msra.mxu0 0.0
    %719 = vmatprep.subr.mxu0 0.0
    %720 = vmatpush1.msra.mxu0 0.0
    %721 = vmatprep.subr.mxu0 0.0
    %722 = vmatpush1.msra.mxu0 0.0
    %723 = vmatprep.subr.mxu0 0.0
    %724 = vmatpush1.msra.mxu0 0.0
    %725 = vmatprep.mubr.f32.mxu0 0.0
    %v726 = vand.u32 %v559, 4294901760
    %727 = vmatmul.mubr.f32.gmra.mrb[0].mxu0 %v726
    %v728 = vpop.f32.mrb[0].mxu0
    %v729 = vadd.f32 %v638, %v728
    %v730 = vpop.f32.mrb[0].mxu0
    %731 = vmatprep.mubr.f32.mxu0 0.0
    %v732 = vand.u32 %v562, 4294901760
    %733 = vmatmul.mubr.f32.gmra.mrb[0].mxu0 %v732
    %v734 = vpop.f32.mrb[0].mxu0
    %v735 = vadd.f32 %v648, %v734
    %v736 = vpop.f32.mrb[0].mxu0
    %737 = vdwg.mxu0
    %738 = vmatprep.subr.mxu0 0.0
    %v739 = vand.u32 %v45, 4294901760
    %v740 = vsub.f32 %v45, %v739
    %741 = vmatpush1.msra.mxu0 %v740
    %742 = vmatprep.subr.mxu0 0.0
    %v743 = vand.u32 %v46, 4294901760
    %v744 = vsub.f32 %v46, %v743
    %745 = vmatpush1.msra.mxu0 %v744
    %746 = vmatprep.subr.mxu0 0.0
    %747 = vmatpush1.msra.mxu0 0.0
    %748 = vmatprep.subr.mxu0 0.0
    %749 = vmatpush1.msra.mxu0 0.0
    %750 = vmatprep.subr.mxu0 0.0
    %751 = vmatpush1.msra.mxu0 0.0
    %752 = vmatprep.subr.mxu0 0.0
    %753 = vmatpush1.msra.mxu0 0.0
    %754 = vmatprep.subr.mxu0 0.0
    %755 = vmatpush1.msra.mxu0 0.0
    %756 = vmatprep.subr.mxu0 0.0
    %757 = vmatpush1.msra.mxu0 0.0
    %758 = vmatprep.subr.mxu0 0.0
    %759 = vmatpush1.msra.mxu0 0.0
    %760 = vmatprep.subr.mxu0 0.0
    %761 = vmatpush1.msra.mxu0 0.0
    %762 = vmatprep.subr.mxu0 0.0
    %763 = vmatpush1.msra.mxu0 0.0
    %764 = vmatprep.subr.mxu0 0.0
    %765 = vmatpush1.msra.mxu0 0.0
    %766 = vmatprep.subr.mxu0 0.0
    %767 = vmatpush1.msra.mxu0 0.0
    %768 = vmatprep.subr.mxu0 0.0
    %769 = vmatpush1.msra.mxu0 0.0
    %770 = vmatprep.subr.mxu0 0.0
    %771 = vmatpush1.msra.mxu0 0.0
    %772 = vmatprep.subr.mxu0 0.0
    %773 = vmatpush1.msra.mxu0 0.0
    %774 = vmatprep.subr.mxu0 0.0
    %775 = vmatpush1.msra.mxu0 0.0
    %776 = vmatprep.subr.mxu0 0.0
    %777 = vmatpush1.msra.mxu0 0.0
    %778 = vmatprep.subr.mxu0 0.0
    %779 = vmatpush1.msra.mxu0 0.0
    %780 = vmatprep.subr.mxu0 0.0
    %781 = vmatpush1.msra.mxu0 0.0
    %782 = vmatprep.subr.mxu0 0.0
    %783 = vmatpush1.msra.mxu0 0.0
    %784 = vmatprep.subr.mxu0 0.0
    %785 = vmatpush1.msra.mxu0 0.0
    %786 = vmatprep.subr.mxu0 0.0
    %787 = vmatpush1.msra.mxu0 0.0
    %788 = vmatprep.subr.mxu0 0.0
    %789 = vmatpush1.msra.mxu0 0.0
    %790 = vmatprep.subr.mxu0 0.0
    %791 = vmatpush1.msra.mxu0 0.0
    %792 = vmatprep.subr.mxu0 0.0
    %793 = vmatpush1.msra.mxu0 0.0
    %794 = vmatprep.subr.mxu0 0.0
    %795 = vmatpush1.msra.mxu0 0.0
    %796 = vmatprep.subr.mxu0 0.0
    %797 = vmatpush1.msra.mxu0 0.0
    %798 = vmatprep.subr.mxu0 0.0
    %799 = vmatpush1.msra.mxu0 0.0
    %800 = vmatprep.subr.mxu0 0.0
    %801 = vmatpush1.msra.mxu0 0.0
    %802 = vmatprep.subr.mxu0 0.0
    %803 = vmatpush1.msra.mxu0 0.0
    %804 = vmatprep.subr.mxu0 0.0
    %805 = vmatpush1.msra.mxu0 0.0
    %806 = vmatprep.mubr.f32.mxu0 0.0
    %v807 = vand.u32 %v559, 4294901760
    %v808 = vsub.f32 %v559, %v807
    %809 = vmatmul.mubr.f32.gmra.mrb[0].mxu0 %v808
    %v810 = vpop.f32.mrb[0].mxu0
    %v811 = vadd.f32 %v729, %v810
    %v812 = vpop.f32.mrb[0].mxu0
    %813 = vmatprep.mubr.f32.mxu0 0.0
    %v814 = vand.u32 %v562, 4294901760
    %v815 = vsub.f32 %v562, %v814
    %816 = vmatmul.mubr.f32.gmra.mrb[0].mxu0 %v815
    %v817 = vpop.f32.mrb[0].mxu0
    %v818 = vadd.f32 %v735, %v817
    %v819 = vpop.f32.mrb[0].mxu0
    %820 = vdwg.mxu0
    %821 = vmatprep.subr.mxu0 0.0
    %v822 = vand.u32 %v45, 4294901760
    %823 = vmatpush1.msra.mxu0 %v822
    %824 = vmatprep.subr.mxu0 0.0
    %v825 = vand.u32 %v46, 4294901760
    %826 = vmatpush1.msra.mxu0 %v825
    %827 = vmatprep.subr.mxu0 0.0
    %828 = vmatpush1.msra.mxu0 0.0
    %829 = vmatprep.subr.mxu0 0.0
    %830 = vmatpush1.msra.mxu0 0.0
    %831 = vmatprep.subr.mxu0 0.0
    %832 = vmatpush1.msra.mxu0 0.0
    %833 = vmatprep.subr.mxu0 0.0
    %834 = vmatpush1.msra.mxu0 0.0
    %835 = vmatprep.subr.mxu0 0.0
    %836 = vmatpush1.msra.mxu0 0.0
    %837 = vmatprep.subr.mxu0 0.0
    %838 = vmatpush1.msra.mxu0 0.0
    %839 = vmatprep.subr.mxu0 0.0
    %840 = vmatpush1.msra.mxu0 0.0
    %841 = vmatprep.subr.mxu0 0.0
    %842 = vmatpush1.msra.mxu0 0.0
    %843 = vmatprep.subr.mxu0 0.0
    %844 = vmatpush1.msra.mxu0 0.0
    %845 = vmatprep.subr.mxu0 0.0
    %846 = vmatpush1.msra.mxu0 0.0
    %847 = vmatprep.subr.mxu0 0.0
    %848 = vmatpush1.msra.mxu0 0.0
    %849 = vmatprep.subr.mxu0 0.0
    %850 = vmatpush1.msra.mxu0 0.0
    %851 = vmatprep.subr.mxu0 0.0
    %852 = vmatpush1.msra.mxu0 0.0
    %853 = vmatprep.subr.mxu0 0.0
    %854 = vmatpush1.msra.mxu0 0.0
    %855 = vmatprep.subr.mxu0 0.0
    %856 = vmatpush1.msra.mxu0 0.0
    %857 = vmatprep.subr.mxu0 0.0
    %858 = vmatpush1.msra.mxu0 0.0
    %859 = vmatprep.subr.mxu0 0.0
    %860 = vmatpush1.msra.mxu0 0.0
    %861 = vmatprep.subr.mxu0 0.0
    %862 = vmatpush1.msra.mxu0 0.0
    %863 = vmatprep.subr.mxu0 0.0
    %864 = vmatpush1.msra.mxu0 0.0
    %865 = vmatprep.subr.mxu0 0.0
    %866 = vmatpush1.msra.mxu0 0.0
    %867 = vmatprep.subr.mxu0 0.0
    %868 = vmatpush1.msra.mxu0 0.0
    %869 = vmatprep.subr.mxu0 0.0
    %870 = vmatpush1.msra.mxu0 0.0
    %871 = vmatprep.subr.mxu0 0.0
    %872 = vmatpush1.msra.mxu0 0.0
    %873 = vmatprep.subr.mxu0 0.0
    %874 = vmatpush1.msra.mxu0 0.0
    %875 = vmatprep.subr.mxu0 0.0
    %876 = vmatpush1.msra.mxu0 0.0
    %877 = vmatprep.subr.mxu0 0.0
    %878 = vmatpush1.msra.mxu0 0.0
    %879 = vmatprep.subr.mxu0 0.0
    %880 = vmatpush1.msra.mxu0 0.0
    %881 = vmatprep.subr.mxu0 0.0
    %882 = vmatpush1.msra.mxu0 0.0
    %883 = vmatprep.subr.mxu0 0.0
    %884 = vmatpush1.msra.mxu0 0.0
    %885 = vmatprep.subr.mxu0 0.0
    %886 = vmatpush1.msra.mxu0 0.0
    %887 = vmatprep.mubr.f32.mxu0 0.0
    %v888 = vand.u32 %v559, 4294901760
    %v889 = vsub.f32 %v559, %v888
    %v890 = vand.u32 %v889, 4294901760
    %891 = vmatmul.mubr.f32.gmra.mrb[0].mxu0 %v890
    %v892 = vpop.f32.mrb[0].mxu0
    %v893 = vadd.f32 %v811, %v892
    %v894 = vpop.f32.mrb[0].mxu0
    %895 = vmatprep.mubr.f32.mxu0 0.0
    %v896 = vand.u32 %v562, 4294901760
    %v897 = vsub.f32 %v562, %v896
    %v898 = vand.u32 %v897, 4294901760
    %899 = vmatmul.mubr.f32.gmra.mrb[0].mxu0 %v898
    %v900 = vpop.f32.mrb[0].mxu0
    %v901 = vadd.f32 %v818, %v900
    %v902 = vpop.f32.mrb[0].mxu0
    %903 = vdwg.mxu0
    %904 = vmatprep.subr.mxu0 0.0
    %v905 = vand.u32 %v45, 4294901760
    %v906 = vsub.f32 %v45, %v905
    %v907 = vand.u32 %v906, 4294901760
    %908 = vmatpush1.msra.mxu0 %v907
    %909 = vmatprep.subr.mxu0 0.0
    %v910 = vand.u32 %v46, 4294901760
    %v911 = vsub.f32 %v46, %v910
    %v912 = vand.u32 %v911, 4294901760
    %913 = vmatpush1.msra.mxu0 %v912
    %914 = vmatprep.subr.mxu0 0.0
    %915 = vmatpush1.msra.mxu0 0.0
    %916 = vmatprep.subr.mxu0 0.0
    %917 = vmatpush1.msra.mxu0 0.0
    %918 = vmatprep.subr.mxu0 0.0
    %919 = vmatpush1.msra.mxu0 0.0
    %920 = vmatprep.subr.mxu0 0.0
    %921 = vmatpush1.msra.mxu0 0.0
    %922 = vmatprep.subr.mxu0 0.0
    %923 = vmatpush1.msra.mxu0 0.0
    %924 = vmatprep.subr.mxu0 0.0
    %925 = vmatpush1.msra.mxu0 0.0
    %926 = vmatprep.subr.mxu0 0.0
    %927 = vmatpush1.msra.mxu0 0.0
    %928 = vmatprep.subr.mxu0 0.0
    %929 = vmatpush1.msra.mxu0 0.0
    %930 = vmatprep.subr.mxu0 0.0
    %931 = vmatpush1.msra.mxu0 0.0
    %932 = vmatprep.subr.mxu0 0.0
    %933 = vmatpush1.msra.mxu0 0.0
    %934 = vmatprep.subr.mxu0 0.0
    %935 = vmatpush1.msra.mxu0 0.0
    %936 = vmatprep.subr.mxu0 0.0
    %937 = vmatpush1.msra.mxu0 0.0
    %938 = vmatprep.subr.mxu0 0.0
    %939 = vmatpush1.msra.mxu0 0.0
    %940 = vmatprep.subr.mxu0 0.0
    %941 = vmatpush1.msra.mxu0 0.0
    %942 = vmatprep.subr.mxu0 0.0
    %943 = vmatpush1.msra.mxu0 0.0
    %944 = vmatprep.subr.mxu0 0.0
    %945 = vmatpush1.msra.mxu0 0.0
    %946 = vmatprep.subr.mxu0 0.0
    %947 = vmatpush1.msra.mxu0 0.0
    %948 = vmatprep.subr.mxu0 0.0
    %949 = vmatpush1.msra.mxu0 0.0
    %950 = vmatprep.subr.mxu0 0.0
    %951 = vmatpush1.msra.mxu0 0.0
    %952 = vmatprep.subr.mxu0 0.0
    %953 = vmatpush1.msra.mxu0 0.0
    %954 = vmatprep.subr.mxu0 0.0
    %955 = vmatpush1.msra.mxu0 0.0
    %956 = vmatprep.subr.mxu0 0.0
    %957 = vmatpush1.msra.mxu0 0.0
    %958 = vmatprep.subr.mxu0 0.0
    %959 = vmatpush1.msra.mxu0 0.0
    %960 = vmatprep.subr.mxu0 0.0
    %961 = vmatpush1.msra.mxu0 0.0
    %962 = vmatprep.subr.mxu0 0.0
    %963 = vmatpush1.msra.mxu0 0.0
    %964 = vmatprep.subr.mxu0 0.0
    %965 = vmatpush1.msra.mxu0 0.0
    %966 = vmatprep.subr.mxu0 0.0
    %967 = vmatpush1.msra.mxu0 0.0
    %968 = vmatprep.subr.mxu0 0.0
    %969 = vmatpush1.msra.mxu0 0.0
    %970 = vmatprep.subr.mxu0 0.0
    %971 = vmatpush1.msra.mxu0 0.0
    %972 = vmatprep.subr.mxu0 0.0
    %973 = vmatpush1.msra.mxu0 0.0
    %974 = vmatprep.mubr.f32.mxu0 0.0
    %v975 = vand.u32 %v559, 4294901760
    %976 = vmatmul.mubr.f32.gmra.mrb[0].mxu0 %v975
    %v977 = vpop.f32.mrb[0].mxu0
    %v978 = vadd.f32 %v893, %v977
    %v979 = vpop.f32.mrb[0].mxu0
    %980 = vmatprep.mubr.f32.mxu0 0.0
    %v981 = vand.u32 %v562, 4294901760
    %982 = vmatmul.mubr.f32.gmra.mrb[0].mxu0 %v981
    %v983 = vpop.f32.mrb[0].mxu0
    %v984 = vadd.f32 %v901, %v983
    %v985 = vpop.f32.mrb[0].mxu0
    %986 = vdwg.mxu0
    %987 = vmatprep.subr.mxu0 0.0
    %v988 = vand.u32 %v45, 4294901760
    %989 = vmatpush1.msra.mxu0 %v988
    %990 = vmatprep.subr.mxu0 0.0
    %v991 = vand.u32 %v46, 4294901760
    %992 = vmatpush1.msra.mxu0 %v991
    %993 = vmatprep.subr.mxu0 0.0
    %994 = vmatpush1.msra.mxu0 0.0
    %995 = vmatprep.subr.mxu0 0.0
    %996 = vmatpush1.msra.mxu0 0.0
    %997 = vmatprep.subr.mxu0 0.0
    %998 = vmatpush1.msra.mxu0 0.0
    %999 = vmatprep.subr.mxu0 0.0
    %1000 = vmatpush1.msra.mxu0 0.0
    %1001 = vmatprep.subr.mxu0 0.0
    %1002 = vmatpush1.msra.mxu0 0.0
    %1003 = vmatprep.subr.mxu0 0.0
    %1004 = vmatpush1.msra.mxu0 0.0
    %1005 = vmatprep.subr.mxu0 0.0
    %1006 = vmatpush1.msra.mxu0 0.0
    %1007 = vmatprep.subr.mxu0 0.0
    %1008 = vmatpush1.msra.mxu0 0.0
    %1009 = vmatprep.subr.mxu0 0.0
    %1010 = vmatpush1.msra.mxu0 0.0
    %1011 = vmatprep.subr.mxu0 0.0
    %1012 = vmatpush1.msra.mxu0 0.0
    %1013 = vmatprep.subr.mxu0 0.0
    %1014 = vmatpush1.msra.mxu0 0.0
    %1015 = vmatprep.subr.mxu0 0.0
    %1016 = vmatpush1.msra.mxu0 0.0
    %1017 = vmatprep.subr.mxu0 0.0
    %1018 = vmatpush1.msra.mxu0 0.0
    %1019 = vmatprep.subr.mxu0 0.0
    %1020 = vmatpush1.msra.mxu0 0.0
    %1021 = vmatprep.subr.mxu0 0.0
    %1022 = vmatpush1.msra.mxu0 0.0
    %1023 = vmatprep.subr.mxu0 0.0
    %1024 = vmatpush1.msra.mxu0 0.0
    %1025 = vmatprep.subr.mxu0 0.0
    %1026 = vmatpush1.msra.mxu0 0.0
    %1027 = vmatprep.subr.mxu0 0.0
    %1028 = vmatpush1.msra.mxu0 0.0
    %1029 = vmatprep.subr.mxu0 0.0
    %1030 = vmatpush1.msra.mxu0 0.0
    %1031 = vmatprep.subr.mxu0 0.0
    %1032 = vmatpush1.msra.mxu0 0.0
    %1033 = vmatprep.subr.mxu0 0.0
    %1034 = vmatpush1.msra.mxu0 0.0
    %1035 = vmatprep.subr.mxu0 0.0
    %1036 = vmatpush1.msra.mxu0 0.0
    %1037 = vmatprep.subr.mxu0 0.0
    %1038 = vmatpush1.msra.mxu0 0.0
    %1039 = vmatprep.subr.mxu0 0.0
    %1040 = vmatpush1.msra.mxu0 0.0
    %1041 = vmatprep.subr.mxu0 0.0
    %1042 = vmatpush1.msra.mxu0 0.0
    %1043 = vmatprep.subr.mxu0 0.0
    %1044 = vmatpush1.msra.mxu0 0.0
    %1045 = vmatprep.subr.mxu0 0.0
    %1046 = vmatpush1.msra.mxu0 0.0
    %1047 = vmatprep.subr.mxu0 0.0
    %1048 = vmatpush1.msra.mxu0 0.0
    %1049 = vmatprep.subr.mxu0 0.0
    %1050 = vmatpush1.msra.mxu0 0.0
    %1051 = vmatprep.subr.mxu0 0.0
    %1052 = vmatpush1.msra.mxu0 0.0
    %1053 = vmatprep.mubr.f32.mxu0 0.0
    %v1054 = vand.u32 %v559, 4294901760
    %1055 = vmatmul.mubr.f32.gmra.mrb[0].mxu0 %v1054
    %v1056 = vpop.f32.mrb[0].mxu0
    %v1057 = vadd.f32 %v978, %v1056
    %v1058 = vpop.f32.mrb[0].mxu0
    %1059 = vmatprep.mubr.f32.mxu0 0.0
    %v1060 = vand.u32 %v562, 4294901760
    %1061 = vmatmul.mubr.f32.gmra.mrb[0].mxu0 %v1060
    %v1062 = vpop.f32.mrb[0].mxu0
    %v1063 = vadd.f32 %v984, %v1062
    %v1064 = vpop.f32.mrb[0].mxu0
    %1065 = vdwg.mxu0
    %v1066 = vmul.f32 %v1057, 2.0
    %v1067 = vmul.f32 %v1063, 2.0
    %v1068 = vsub.f32 %v1066, %v47
    %v1069 = vsub.f32 %v1067, %v48
    %v1071 = vsel %vm49, %v1068, 0
    %v1074 = vsel %vm49, %v1069, 0
    %1076 = vmatprep.subr.mxu0 0.0
    %v1077 = vand.u32 %v45, 4294901760
    %1078 = vmatpush1.msra.mxu0 %v1077
    %1079 = vmatprep.subr.mxu0 0.0
    %v1080 = vand.u32 %v46, 4294901760
    %1081 = vmatpush1.msra.mxu0 %v1080
    %1082 = vmatprep.subr.mxu0 0.0
    %1083 = vmatpush1.msra.mxu0 0.0
    %1084 = vmatprep.subr.mxu0 0.0
    %1085 = vmatpush1.msra.mxu0 0.0
    %1086 = vmatprep.subr.mxu0 0.0
    %1087 = vmatpush1.msra.mxu0 0.0
    %1088 = vmatprep.subr.mxu0 0.0
    %1089 = vmatpush1.msra.mxu0 0.0
    %1090 = vmatprep.subr.mxu0 0.0
    %1091 = vmatpush1.msra.mxu0 0.0
    %1092 = vmatprep.subr.mxu0 0.0
    %1093 = vmatpush1.msra.mxu0 0.0
    %1094 = vmatprep.subr.mxu0 0.0
    %1095 = vmatpush1.msra.mxu0 0.0
    %1096 = vmatprep.subr.mxu0 0.0
    %1097 = vmatpush1.msra.mxu0 0.0
    %1098 = vmatprep.subr.mxu0 0.0
    %1099 = vmatpush1.msra.mxu0 0.0
    %1100 = vmatprep.subr.mxu0 0.0
    %1101 = vmatpush1.msra.mxu0 0.0
    %1102 = vmatprep.subr.mxu0 0.0
    %1103 = vmatpush1.msra.mxu0 0.0
    %1104 = vmatprep.subr.mxu0 0.0
    %1105 = vmatpush1.msra.mxu0 0.0
    %1106 = vmatprep.subr.mxu0 0.0
    %1107 = vmatpush1.msra.mxu0 0.0
    %1108 = vmatprep.subr.mxu0 0.0
    %1109 = vmatpush1.msra.mxu0 0.0
    %1110 = vmatprep.subr.mxu0 0.0
    %1111 = vmatpush1.msra.mxu0 0.0
    %1112 = vmatprep.subr.mxu0 0.0
    %1113 = vmatpush1.msra.mxu0 0.0
    %1114 = vmatprep.subr.mxu0 0.0
    %1115 = vmatpush1.msra.mxu0 0.0
    %1116 = vmatprep.subr.mxu0 0.0
    %1117 = vmatpush1.msra.mxu0 0.0
    %1118 = vmatprep.subr.mxu0 0.0
    %1119 = vmatpush1.msra.mxu0 0.0
    %1120 = vmatprep.subr.mxu0 0.0
    %1121 = vmatpush1.msra.mxu0 0.0
    %1122 = vmatprep.subr.mxu0 0.0
    %1123 = vmatpush1.msra.mxu0 0.0
    %1124 = vmatprep.subr.mxu0 0.0
    %1125 = vmatpush1.msra.mxu0 0.0
    %1126 = vmatprep.subr.mxu0 0.0
    %1127 = vmatpush1.msra.mxu0 0.0
    %1128 = vmatprep.subr.mxu0 0.0
    %1129 = vmatpush1.msra.mxu0 0.0
    %1130 = vmatprep.subr.mxu0 0.0
    %1131 = vmatpush1.msra.mxu0 0.0
    %1132 = vmatprep.subr.mxu0 0.0
    %1133 = vmatpush1.msra.mxu0 0.0
    %1134 = vmatprep.subr.mxu0 0.0
    %1135 = vmatpush1.msra.mxu0 0.0
    %1136 = vmatprep.subr.mxu0 0.0
    %1137 = vmatpush1.msra.mxu0 0.0
    %1138 = vmatprep.subr.mxu0 0.0
    %1139 = vmatpush1.msra.mxu0 0.0
    %1140 = vmatprep.subr.mxu0 0.0
    %1141 = vmatpush1.msra.mxu0 0.0
    %1142 = vmatprep.mubr.f32.mxu0 0.0
    %v1143 = vand.u32 %v1071, 4294901760
    %v1144 = vsub.f32 %v1071, %v1143
    %v1145 = vand.u32 %v1144, 4294901760
    %v1146 = vsub.f32 %v1144, %v1145
    %v1147 = vand.u32 %v1146, 4294901760
    %1148 = vmatmul.mubr.f32.gmra.mrb[0].mxu0 %v1147
    %v1149 = vpop.f32.mrb[0].mxu0
    %v1150 = vadd.f32 0.0, %v1149
    %v1151 = vpop.f32.mrb[0].mxu0
    %1152 = vmatprep.mubr.f32.mxu0 0.0
    %v1153 = vand.u32 %v1074, 4294901760
    %v1154 = vsub.f32 %v1074, %v1153
    %v1155 = vand.u32 %v1154, 4294901760
    %v1156 = vsub.f32 %v1154, %v1155
    %v1157 = vand.u32 %v1156, 4294901760
    %1158 = vmatmul.mubr.f32.gmra.mrb[0].mxu0 %v1157
    %v1159 = vpop.f32.mrb[0].mxu0
    %v1160 = vadd.f32 0.0, %v1159
    %v1161 = vpop.f32.mrb[0].mxu0
    %1162 = vdwg.mxu0
    %1163 = vmatprep.subr.mxu0 0.0
    %v1164 = vand.u32 %v45, 4294901760
    %v1165 = vsub.f32 %v45, %v1164
    %v1166 = vand.u32 %v1165, 4294901760
    %v1167 = vsub.f32 %v1165, %v1166
    %v1168 = vand.u32 %v1167, 4294901760
    %1169 = vmatpush1.msra.mxu0 %v1168
    %1170 = vmatprep.subr.mxu0 0.0
    %v1171 = vand.u32 %v46, 4294901760
    %v1172 = vsub.f32 %v46, %v1171
    %v1173 = vand.u32 %v1172, 4294901760
    %v1174 = vsub.f32 %v1172, %v1173
    %v1175 = vand.u32 %v1174, 4294901760
    %1176 = vmatpush1.msra.mxu0 %v1175
    %1177 = vmatprep.subr.mxu0 0.0
    %1178 = vmatpush1.msra.mxu0 0.0
    %1179 = vmatprep.subr.mxu0 0.0
    %1180 = vmatpush1.msra.mxu0 0.0
    %1181 = vmatprep.subr.mxu0 0.0
    %1182 = vmatpush1.msra.mxu0 0.0
    %1183 = vmatprep.subr.mxu0 0.0
    %1184 = vmatpush1.msra.mxu0 0.0
    %1185 = vmatprep.subr.mxu0 0.0
    %1186 = vmatpush1.msra.mxu0 0.0
    %1187 = vmatprep.subr.mxu0 0.0
    %1188 = vmatpush1.msra.mxu0 0.0
    %1189 = vmatprep.subr.mxu0 0.0
    %1190 = vmatpush1.msra.mxu0 0.0
    %1191 = vmatprep.subr.mxu0 0.0
    %1192 = vmatpush1.msra.mxu0 0.0
    %1193 = vmatprep.subr.mxu0 0.0
    %1194 = vmatpush1.msra.mxu0 0.0
    %1195 = vmatprep.subr.mxu0 0.0
    %1196 = vmatpush1.msra.mxu0 0.0
    %1197 = vmatprep.subr.mxu0 0.0
    %1198 = vmatpush1.msra.mxu0 0.0
    %1199 = vmatprep.subr.mxu0 0.0
    %1200 = vmatpush1.msra.mxu0 0.0
    %1201 = vmatprep.subr.mxu0 0.0
    %1202 = vmatpush1.msra.mxu0 0.0
    %1203 = vmatprep.subr.mxu0 0.0
    %1204 = vmatpush1.msra.mxu0 0.0
    %1205 = vmatprep.subr.mxu0 0.0
    %1206 = vmatpush1.msra.mxu0 0.0
    %1207 = vmatprep.subr.mxu0 0.0
    %1208 = vmatpush1.msra.mxu0 0.0
    %1209 = vmatprep.subr.mxu0 0.0
    %1210 = vmatpush1.msra.mxu0 0.0
    %1211 = vmatprep.subr.mxu0 0.0
    %1212 = vmatpush1.msra.mxu0 0.0
    %1213 = vmatprep.subr.mxu0 0.0
    %1214 = vmatpush1.msra.mxu0 0.0
    %1215 = vmatprep.subr.mxu0 0.0
    %1216 = vmatpush1.msra.mxu0 0.0
    %1217 = vmatprep.subr.mxu0 0.0
    %1218 = vmatpush1.msra.mxu0 0.0
    %1219 = vmatprep.subr.mxu0 0.0
    %1220 = vmatpush1.msra.mxu0 0.0
    %1221 = vmatprep.subr.mxu0 0.0
    %1222 = vmatpush1.msra.mxu0 0.0
    %1223 = vmatprep.subr.mxu0 0.0
    %1224 = vmatpush1.msra.mxu0 0.0
    %1225 = vmatprep.subr.mxu0 0.0
    %1226 = vmatpush1.msra.mxu0 0.0
    %1227 = vmatprep.subr.mxu0 0.0
    %1228 = vmatpush1.msra.mxu0 0.0
    %1229 = vmatprep.subr.mxu0 0.0
    %1230 = vmatpush1.msra.mxu0 0.0
    %1231 = vmatprep.subr.mxu0 0.0
    %1232 = vmatpush1.msra.mxu0 0.0
    %1233 = vmatprep.subr.mxu0 0.0
    %1234 = vmatpush1.msra.mxu0 0.0
    %1235 = vmatprep.subr.mxu0 0.0
    %1236 = vmatpush1.msra.mxu0 0.0
    %1237 = vmatprep.mubr.f32.mxu0 0.0
    %v1238 = vand.u32 %v1071, 4294901760
    %1239 = vmatmul.mubr.f32.gmra.mrb[0].mxu0 %v1238
    %v1240 = vpop.f32.mrb[0].mxu0
    %v1241 = vadd.f32 %v1150, %v1240
    %v1242 = vpop.f32.mrb[0].mxu0
    %1243 = vmatprep.mubr.f32.mxu0 0.0
    %v1244 = vand.u32 %v1074, 4294901760
    %1245 = vmatmul.mubr.f32.gmra.mrb[0].mxu0 %v1244
    %v1246 = vpop.f32.mrb[0].mxu0
    %v1247 = vadd.f32 %v1160, %v1246
    %v1248 = vpop.f32.mrb[0].mxu0
    %1249 = vdwg.mxu0
    %1250 = vmatprep.subr.mxu0 0.0
    %v1251 = vand.u32 %v45, 4294901760
    %v1252 = vsub.f32 %v45, %v1251
    %1253 = vmatpush1.msra.mxu0 %v1252
    %1254 = vmatprep.subr.mxu0 0.0
    %v1255 = vand.u32 %v46, 4294901760
    %v1256 = vsub.f32 %v46, %v1255
    %1257 = vmatpush1.msra.mxu0 %v1256
    %1258 = vmatprep.subr.mxu0 0.0
    %1259 = vmatpush1.msra.mxu0 0.0
    %1260 = vmatprep.subr.mxu0 0.0
    %1261 = vmatpush1.msra.mxu0 0.0
    %1262 = vmatprep.subr.mxu0 0.0
    %1263 = vmatpush1.msra.mxu0 0.0
    %1264 = vmatprep.subr.mxu0 0.0
    %1265 = vmatpush1.msra.mxu0 0.0
    %1266 = vmatprep.subr.mxu0 0.0
    %1267 = vmatpush1.msra.mxu0 0.0
    %1268 = vmatprep.subr.mxu0 0.0
    %1269 = vmatpush1.msra.mxu0 0.0
    %1270 = vmatprep.subr.mxu0 0.0
    %1271 = vmatpush1.msra.mxu0 0.0
    %1272 = vmatprep.subr.mxu0 0.0
    %1273 = vmatpush1.msra.mxu0 0.0
    %1274 = vmatprep.subr.mxu0 0.0
    %1275 = vmatpush1.msra.mxu0 0.0
    %1276 = vmatprep.subr.mxu0 0.0
    %1277 = vmatpush1.msra.mxu0 0.0
    %1278 = vmatprep.subr.mxu0 0.0
    %1279 = vmatpush1.msra.mxu0 0.0
    %1280 = vmatprep.subr.mxu0 0.0
    %1281 = vmatpush1.msra.mxu0 0.0
    %1282 = vmatprep.subr.mxu0 0.0
    %1283 = vmatpush1.msra.mxu0 0.0
    %1284 = vmatprep.subr.mxu0 0.0
    %1285 = vmatpush1.msra.mxu0 0.0
    %1286 = vmatprep.subr.mxu0 0.0
    %1287 = vmatpush1.msra.mxu0 0.0
    %1288 = vmatprep.subr.mxu0 0.0
    %1289 = vmatpush1.msra.mxu0 0.0
    %1290 = vmatprep.subr.mxu0 0.0
    %1291 = vmatpush1.msra.mxu0 0.0
    %1292 = vmatprep.subr.mxu0 0.0
    %1293 = vmatpush1.msra.mxu0 0.0
    %1294 = vmatprep.subr.mxu0 0.0
    %1295 = vmatpush1.msra.mxu0 0.0
    %1296 = vmatprep.subr.mxu0 0.0
    %1297 = vmatpush1.msra.mxu0 0.0
    %1298 = vmatprep.subr.mxu0 0.0
    %1299 = vmatpush1.msra.mxu0 0.0
    %1300 = vmatprep.subr.mxu0 0.0
    %1301 = vmatpush1.msra.mxu0 0.0
    %1302 = vmatprep.subr.mxu0 0.0
    %1303 = vmatpush1.msra.mxu0 0.0
    %1304 = vmatprep.subr.mxu0 0.0
    %1305 = vmatpush1.msra.mxu0 0.0
    %1306 = vmatprep.subr.mxu0 0.0
    %1307 = vmatpush1.msra.mxu0 0.0
    %1308 = vmatprep.subr.mxu0 0.0
    %1309 = vmatpush1.msra.mxu0 0.0
    %1310 = vmatprep.subr.mxu0 0.0
    %1311 = vmatpush1.msra.mxu0 0.0
    %1312 = vmatprep.subr.mxu0 0.0
    %1313 = vmatpush1.msra.mxu0 0.0
    %1314 = vmatprep.subr.mxu0 0.0
    %1315 = vmatpush1.msra.mxu0 0.0
    %1316 = vmatprep.subr.mxu0 0.0
    %1317 = vmatpush1.msra.mxu0 0.0
    %1318 = vmatprep.mubr.f32.mxu0 0.0
    %v1319 = vand.u32 %v1071, 4294901760
    %v1320 = vsub.f32 %v1071, %v1319
    %1321 = vmatmul.mubr.f32.gmra.mrb[0].mxu0 %v1320
    %v1322 = vpop.f32.mrb[0].mxu0
    %v1323 = vadd.f32 %v1241, %v1322
    %v1324 = vpop.f32.mrb[0].mxu0
    %1325 = vmatprep.mubr.f32.mxu0 0.0
    %v1326 = vand.u32 %v1074, 4294901760
    %v1327 = vsub.f32 %v1074, %v1326
    %1328 = vmatmul.mubr.f32.gmra.mrb[0].mxu0 %v1327
    %v1329 = vpop.f32.mrb[0].mxu0
    %v1330 = vadd.f32 %v1247, %v1329
    %v1331 = vpop.f32.mrb[0].mxu0
    %1332 = vdwg.mxu0
    %1333 = vmatprep.subr.mxu0 0.0
    %v1334 = vand.u32 %v45, 4294901760
    %1335 = vmatpush1.msra.mxu0 %v1334
    %1336 = vmatprep.subr.mxu0 0.0
    %v1337 = vand.u32 %v46, 4294901760
    %1338 = vmatpush1.msra.mxu0 %v1337
    %1339 = vmatprep.subr.mxu0 0.0
    %1340 = vmatpush1.msra.mxu0 0.0
    %1341 = vmatprep.subr.mxu0 0.0
    %1342 = vmatpush1.msra.mxu0 0.0
    %1343 = vmatprep.subr.mxu0 0.0
    %1344 = vmatpush1.msra.mxu0 0.0
    %1345 = vmatprep.subr.mxu0 0.0
    %1346 = vmatpush1.msra.mxu0 0.0
    %1347 = vmatprep.subr.mxu0 0.0
    %1348 = vmatpush1.msra.mxu0 0.0
    %1349 = vmatprep.subr.mxu0 0.0
    %1350 = vmatpush1.msra.mxu0 0.0
    %1351 = vmatprep.subr.mxu0 0.0
    %1352 = vmatpush1.msra.mxu0 0.0
    %1353 = vmatprep.subr.mxu0 0.0
    %1354 = vmatpush1.msra.mxu0 0.0
    %1355 = vmatprep.subr.mxu0 0.0
    %1356 = vmatpush1.msra.mxu0 0.0
    %1357 = vmatprep.subr.mxu0 0.0
    %1358 = vmatpush1.msra.mxu0 0.0
    %1359 = vmatprep.subr.mxu0 0.0
    %1360 = vmatpush1.msra.mxu0 0.0
    %1361 = vmatprep.subr.mxu0 0.0
    %1362 = vmatpush1.msra.mxu0 0.0
    %1363 = vmatprep.subr.mxu0 0.0
    %1364 = vmatpush1.msra.mxu0 0.0
    %1365 = vmatprep.subr.mxu0 0.0
    %1366 = vmatpush1.msra.mxu0 0.0
    %1367 = vmatprep.subr.mxu0 0.0
    %1368 = vmatpush1.msra.mxu0 0.0
    %1369 = vmatprep.subr.mxu0 0.0
    %1370 = vmatpush1.msra.mxu0 0.0
    %1371 = vmatprep.subr.mxu0 0.0
    %1372 = vmatpush1.msra.mxu0 0.0
    %1373 = vmatprep.subr.mxu0 0.0
    %1374 = vmatpush1.msra.mxu0 0.0
    %1375 = vmatprep.subr.mxu0 0.0
    %1376 = vmatpush1.msra.mxu0 0.0
    %1377 = vmatprep.subr.mxu0 0.0
    %1378 = vmatpush1.msra.mxu0 0.0
    %1379 = vmatprep.subr.mxu0 0.0
    %1380 = vmatpush1.msra.mxu0 0.0
    %1381 = vmatprep.subr.mxu0 0.0
    %1382 = vmatpush1.msra.mxu0 0.0
    %1383 = vmatprep.subr.mxu0 0.0
    %1384 = vmatpush1.msra.mxu0 0.0
    %1385 = vmatprep.subr.mxu0 0.0
    %1386 = vmatpush1.msra.mxu0 0.0
    %1387 = vmatprep.subr.mxu0 0.0
    %1388 = vmatpush1.msra.mxu0 0.0
    %1389 = vmatprep.subr.mxu0 0.0
    %1390 = vmatpush1.msra.mxu0 0.0
    %1391 = vmatprep.subr.mxu0 0.0
    %1392 = vmatpush1.msra.mxu0 0.0
    %1393 = vmatprep.subr.mxu0 0.0
    %1394 = vmatpush1.msra.mxu0 0.0
    %1395 = vmatprep.subr.mxu0 0.0
    %1396 = vmatpush1.msra.mxu0 0.0
    %1397 = vmatprep.subr.mxu0 0.0
    %1398 = vmatpush1.msra.mxu0 0.0
    %1399 = vmatprep.mubr.f32.mxu0 0.0
    %v1400 = vand.u32 %v1071, 4294901760
    %v1401 = vsub.f32 %v1071, %v1400
    %v1402 = vand.u32 %v1401, 4294901760
    %1403 = vmatmul.mubr.f32.gmra.mrb[0].mxu0 %v1402
    %v1404 = vpop.f32.mrb[0].mxu0
    %v1405 = vadd.f32 %v1323, %v1404
    %v1406 = vpop.f32.mrb[0].mxu0
    %1407 = vmatprep.mubr.f32.mxu0 0.0
    %v1408 = vand.u32 %v1074, 4294901760
    %v1409 = vsub.f32 %v1074, %v1408
    %v1410 = vand.u32 %v1409, 4294901760
    %1411 = vmatmul.mubr.f32.gmra.mrb[0].mxu0 %v1410
    %v1412 = vpop.f32.mrb[0].mxu0
    %v1413 = vadd.f32 %v1330, %v1412
    %v1414 = vpop.f32.mrb[0].mxu0
    %1415 = vdwg.mxu0
    %1416 = vmatprep.subr.mxu0 0.0
    %v1417 = vand.u32 %v45, 4294901760
    %v1418 = vsub.f32 %v45, %v1417
    %v1419 = vand.u32 %v1418, 4294901760
    %1420 = vmatpush1.msra.mxu0 %v1419
    %1421 = vmatprep.subr.mxu0 0.0
    %v1422 = vand.u32 %v46, 4294901760
    %v1423 = vsub.f32 %v46, %v1422
    %v1424 = vand.u32 %v1423, 4294901760
    %1425 = vmatpush1.msra.mxu0 %v1424
    %1426 = vmatprep.subr.mxu0 0.0
    %1427 = vmatpush1.msra.mxu0 0.0
    %1428 = vmatprep.subr.mxu0 0.0
    %1429 = vmatpush1.msra.mxu0 0.0
    %1430 = vmatprep.subr.mxu0 0.0
    %1431 = vmatpush1.msra.mxu0 0.0
    %1432 = vmatprep.subr.mxu0 0.0
    %1433 = vmatpush1.msra.mxu0 0.0
    %1434 = vmatprep.subr.mxu0 0.0
    %1435 = vmatpush1.msra.mxu0 0.0
    %1436 = vmatprep.subr.mxu0 0.0
    %1437 = vmatpush1.msra.mxu0 0.0
    %1438 = vmatprep.subr.mxu0 0.0
    %1439 = vmatpush1.msra.mxu0 0.0
    %1440 = vmatprep.subr.mxu0 0.0
    %1441 = vmatpush1.msra.mxu0 0.0
    %1442 = vmatprep.subr.mxu0 0.0
    %1443 = vmatpush1.msra.mxu0 0.0
    %1444 = vmatprep.subr.mxu0 0.0
    %1445 = vmatpush1.msra.mxu0 0.0
    %1446 = vmatprep.subr.mxu0 0.0
    %1447 = vmatpush1.msra.mxu0 0.0
    %1448 = vmatprep.subr.mxu0 0.0
    %1449 = vmatpush1.msra.mxu0 0.0
    %1450 = vmatprep.subr.mxu0 0.0
    %1451 = vmatpush1.msra.mxu0 0.0
    %1452 = vmatprep.subr.mxu0 0.0
    %1453 = vmatpush1.msra.mxu0 0.0
    %1454 = vmatprep.subr.mxu0 0.0
    %1455 = vmatpush1.msra.mxu0 0.0
    %1456 = vmatprep.subr.mxu0 0.0
    %1457 = vmatpush1.msra.mxu0 0.0
    %1458 = vmatprep.subr.mxu0 0.0
    %1459 = vmatpush1.msra.mxu0 0.0
    %1460 = vmatprep.subr.mxu0 0.0
    %1461 = vmatpush1.msra.mxu0 0.0
    %1462 = vmatprep.subr.mxu0 0.0
    %1463 = vmatpush1.msra.mxu0 0.0
    %1464 = vmatprep.subr.mxu0 0.0
    %1465 = vmatpush1.msra.mxu0 0.0
    %1466 = vmatprep.subr.mxu0 0.0
    %1467 = vmatpush1.msra.mxu0 0.0
    %1468 = vmatprep.subr.mxu0 0.0
    %1469 = vmatpush1.msra.mxu0 0.0
    %1470 = vmatprep.subr.mxu0 0.0
    %1471 = vmatpush1.msra.mxu0 0.0
    %1472 = vmatprep.subr.mxu0 0.0
    %1473 = vmatpush1.msra.mxu0 0.0
    %1474 = vmatprep.subr.mxu0 0.0
    %1475 = vmatpush1.msra.mxu0 0.0
    %1476 = vmatprep.subr.mxu0 0.0
    %1477 = vmatpush1.msra.mxu0 0.0
    %1478 = vmatprep.subr.mxu0 0.0
    %1479 = vmatpush1.msra.mxu0 0.0
    %1480 = vmatprep.subr.mxu0 0.0
    %1481 = vmatpush1.msra.mxu0 0.0
    %1482 = vmatprep.subr.mxu0 0.0
    %1483 = vmatpush1.msra.mxu0 0.0
    %1484 = vmatprep.subr.mxu0 0.0
    %1485 = vmatpush1.msra.mxu0 0.0
    %1486 = vmatprep.mubr.f32.mxu0 0.0
    %v1487 = vand.u32 %v1071, 4294901760
    %1488 = vmatmul.mubr.f32.gmra.mrb[0].mxu0 %v1487
    %v1489 = vpop.f32.mrb[0].mxu0
    %v1490 = vadd.f32 %v1405, %v1489
    %v1491 = vpop.f32.mrb[0].mxu0
    %1492 = vmatprep.mubr.f32.mxu0 0.0
    %v1493 = vand.u32 %v1074, 4294901760
    %1494 = vmatmul.mubr.f32.gmra.mrb[0].mxu0 %v1493
    %v1495 = vpop.f32.mrb[0].mxu0
    %v1496 = vadd.f32 %v1413, %v1495
    %v1497 = vpop.f32.mrb[0].mxu0
    %1498 = vdwg.mxu0
    %1499 = vmatprep.subr.mxu0 0.0
    %v1500 = vand.u32 %v45, 4294901760
    %1501 = vmatpush1.msra.mxu0 %v1500
    %1502 = vmatprep.subr.mxu0 0.0
    %v1503 = vand.u32 %v46, 4294901760
    %1504 = vmatpush1.msra.mxu0 %v1503
    %1505 = vmatprep.subr.mxu0 0.0
    %1506 = vmatpush1.msra.mxu0 0.0
    %1507 = vmatprep.subr.mxu0 0.0
    %1508 = vmatpush1.msra.mxu0 0.0
    %1509 = vmatprep.subr.mxu0 0.0
    %1510 = vmatpush1.msra.mxu0 0.0
    %1511 = vmatprep.subr.mxu0 0.0
    %1512 = vmatpush1.msra.mxu0 0.0
    %1513 = vmatprep.subr.mxu0 0.0
    %1514 = vmatpush1.msra.mxu0 0.0
    %1515 = vmatprep.subr.mxu0 0.0
    %1516 = vmatpush1.msra.mxu0 0.0
    %1517 = vmatprep.subr.mxu0 0.0
    %1518 = vmatpush1.msra.mxu0 0.0
    %1519 = vmatprep.subr.mxu0 0.0
    %1520 = vmatpush1.msra.mxu0 0.0
    %1521 = vmatprep.subr.mxu0 0.0
    %1522 = vmatpush1.msra.mxu0 0.0
    %1523 = vmatprep.subr.mxu0 0.0
    %1524 = vmatpush1.msra.mxu0 0.0
    %1525 = vmatprep.subr.mxu0 0.0
    %1526 = vmatpush1.msra.mxu0 0.0
    %1527 = vmatprep.subr.mxu0 0.0
    %1528 = vmatpush1.msra.mxu0 0.0
    %1529 = vmatprep.subr.mxu0 0.0
    %1530 = vmatpush1.msra.mxu0 0.0
    %1531 = vmatprep.subr.mxu0 0.0
    %1532 = vmatpush1.msra.mxu0 0.0
    %1533 = vmatprep.subr.mxu0 0.0
    %1534 = vmatpush1.msra.mxu0 0.0
    %1535 = vmatprep.subr.mxu0 0.0
    %1536 = vmatpush1.msra.mxu0 0.0
    %1537 = vmatprep.subr.mxu0 0.0
    %1538 = vmatpush1.msra.mxu0 0.0
    %1539 = vmatprep.subr.mxu0 0.0
    %1540 = vmatpush1.msra.mxu0 0.0
    %1541 = vmatprep.subr.mxu0 0.0
    %1542 = vmatpush1.msra.mxu0 0.0
    %1543 = vmatprep.subr.mxu0 0.0
    %1544 = vmatpush1.msra.mxu0 0.0
    %1545 = vmatprep.subr.mxu0 0.0
    %1546 = vmatpush1.msra.mxu0 0.0
    %1547 = vmatprep.subr.mxu0 0.0
    %1548 = vmatpush1.msra.mxu0 0.0
    %1549 = vmatprep.subr.mxu0 0.0
    %1550 = vmatpush1.msra.mxu0 0.0
    %1551 = vmatprep.subr.mxu0 0.0
    %1552 = vmatpush1.msra.mxu0 0.0
    %1553 = vmatprep.subr.mxu0 0.0
    %1554 = vmatpush1.msra.mxu0 0.0
    %1555 = vmatprep.subr.mxu0 0.0
    %1556 = vmatpush1.msra.mxu0 0.0
    %1557 = vmatprep.subr.mxu0 0.0
    %1558 = vmatpush1.msra.mxu0 0.0
    %1559 = vmatprep.subr.mxu0 0.0
    %1560 = vmatpush1.msra.mxu0 0.0
    %1561 = vmatprep.subr.mxu0 0.0
    %1562 = vmatpush1.msra.mxu0 0.0
    %1563 = vmatprep.subr.mxu0 0.0
    %1564 = vmatpush1.msra.mxu0 0.0
    %1565 = vmatprep.mubr.f32.mxu0 0.0
    %v1566 = vand.u32 %v1071, 4294901760
    %1567 = vmatmul.mubr.f32.gmra.mrb[0].mxu0 %v1566
    %v1568 = vpop.f32.mrb[0].mxu0
    %v1569 = vadd.f32 %v1490, %v1568
    %v1570 = vpop.f32.mrb[0].mxu0
    %1571 = vmatprep.mubr.f32.mxu0 0.0
    %v1572 = vand.u32 %v1074, 4294901760
    %1573 = vmatmul.mubr.f32.gmra.mrb[0].mxu0 %v1572
    %v1574 = vpop.f32.mrb[0].mxu0
    %v1575 = vadd.f32 %v1496, %v1574
    %v1576 = vpop.f32.mrb[0].mxu0
    %1577 = vdwg.mxu0
    %v1578 = vmul.f32 %v1569, 2.0
    %v1579 = vmul.f32 %v1575, 2.0
    %v1580 = vsub.f32 %v1578, %v549
    %v1581 = vsub.f32 %v1579, %v555
    %v1582 = vld [vmem:[%s2] sm:$0xff]
    %v1583 = vld [vmem:[%s2 + $0x8] sm:$0xff]
    %v1584 = vld [vmem:[%s2 + $0x10] sm:$0xff]
    %v1585 = vld [vmem:[%s2 + $0x18] sm:$0xff]
    %v1586 = vld [vmem:[%s3] sm:$0xff]
    %v1587 = vld [vmem:[%s3 + $0x8] sm:$0xff]
    %v1588 = vld [vmem:[%s3 + $0x10] sm:$0xff]
    %v1589 = vld [vmem:[%s3 + $0x18] sm:$0xff]
    %1591 = vset.pattern.permute.xlu0 0
    %1592 = vperm.xlu0 %1591, %v1586
    %v1593 = vpop.permute.xlu0 %1592
    %1596 = vset.pattern.permute.xlu0 0
    %1597 = vperm.xlu0 %1596, %v1587
    %v1598 = vpop.permute.xlu0 %1597
    %1601 = vset.pattern.permute.xlu0 0
    %1602 = vperm.xlu0 %1601, %v1588
    %v1603 = vpop.permute.xlu0 %1602
    %1606 = vset.pattern.permute.xlu0 0
    %1607 = vperm.xlu0 %1606, %v1589
    %v1608 = vpop.permute.xlu0 %1607
    %vm1610 = vcmask 523264
    %v1612 = vsel %vm1610, %v1582, 0
    %v1615 = vsel %vm1610, %v1583, 0
    %v1618 = vsel %vm1610, %v1584, 0
    %v1621 = vsel %vm1610, %v1585, 0
    %1623 = vmatprep.subr.mxu0 0.0
    %v1624 = vand.u32 %v47, 4294901760
    %1625 = vmatpush1.msra.mxu0 %v1624
    %1626 = vmatprep.subr.mxu0 0.0
    %v1627 = vand.u32 %v48, 4294901760
    %1628 = vmatpush1.msra.mxu0 %v1627
    %1629 = vmatprep.subr.mxu0 0.0
    %v1630 = vand.u32 %v549, 4294901760
    %1631 = vmatpush1.msra.mxu0 %v1630
    %1632 = vmatprep.subr.mxu0 0.0
    %v1633 = vand.u32 %v555, 4294901760
    %1634 = vmatpush1.msra.mxu0 %v1633
    %1635 = vmatprep.subr.mxu0 0.0
    %v1636 = vand.u32 %v1068, 4294901760
    %1637 = vmatpush1.msra.mxu0 %v1636
    %1638 = vmatprep.subr.mxu0 0.0
    %v1639 = vand.u32 %v1069, 4294901760
    %1640 = vmatpush1.msra.mxu0 %v1639
    %1641 = vmatprep.subr.mxu0 0.0
    %v1642 = vand.u32 %v1580, 4294901760
    %1643 = vmatpush1.msra.mxu0 %v1642
    %1644 = vmatprep.subr.mxu0 0.0
    %v1645 = vand.u32 %v1581, 4294901760
    %1646 = vmatpush1.msra.mxu0 %v1645
    %1647 = vmatprep.subr.mxu0 0.0
    %1648 = vmatpush1.msra.mxu0 0.0
    %1649 = vmatprep.subr.mxu0 0.0
    %1650 = vmatpush1.msra.mxu0 0.0
    %1651 = vmatprep.subr.mxu0 0.0
    %1652 = vmatpush1.msra.mxu0 0.0
    %1653 = vmatprep.subr.mxu0 0.0
    %1654 = vmatpush1.msra.mxu0 0.0
    %1655 = vmatprep.subr.mxu0 0.0
    %1656 = vmatpush1.msra.mxu0 0.0
    %1657 = vmatprep.subr.mxu0 0.0
    %1658 = vmatpush1.msra.mxu0 0.0
    %1659 = vmatprep.subr.mxu0 0.0
    %1660 = vmatpush1.msra.mxu0 0.0
    %1661 = vmatprep.subr.mxu0 0.0
    %1662 = vmatpush1.msra.mxu0 0.0
    %1663 = vmatprep.subr.mxu0 0.0
    %1664 = vmatpush1.msra.mxu0 0.0
    %1665 = vmatprep.subr.mxu0 0.0
    %1666 = vmatpush1.msra.mxu0 0.0
    %1667 = vmatprep.subr.mxu0 0.0
    %1668 = vmatpush1.msra.mxu0 0.0
    %1669 = vmatprep.subr.mxu0 0.0
    %1670 = vmatpush1.msra.mxu0 0.0
    %1671 = vmatprep.subr.mxu0 0.0
    %1672 = vmatpush1.msra.mxu0 0.0
    %1673 = vmatprep.subr.mxu0 0.0
    %1674 = vmatpush1.msra.mxu0 0.0
    %1675 = vmatprep.subr.mxu0 0.0
    %1676 = vmatpush1.msra.mxu0 0.0
    %1677 = vmatprep.subr.mxu0 0.0
    %1678 = vmatpush1.msra.mxu0 0.0
    %1679 = vmatprep.subr.mxu0 0.0
    %1680 = vmatpush1.msra.mxu0 0.0
    %1681 = vmatprep.subr.mxu0 0.0
    %1682 = vmatpush1.msra.mxu0 0.0
    %1683 = vmatprep.subr.mxu0 0.0
    %1684 = vmatpush1.msra.mxu0 0.0
    %1685 = vmatprep.subr.mxu0 0.0
    %1686 = vmatpush1.msra.mxu0 0.0
    %1687 = vmatprep.subr.mxu0 0.0
    %1688 = vmatpush1.msra.mxu0 0.0
    %1689 = vmatprep.subr.mxu0 0.0
    %1690 = vmatpush1.msra.mxu0 0.0
    %1691 = vmatprep.subr.mxu0 0.0
    %1692 = vmatpush1.msra.mxu0 0.0
    %1693 = vmatprep.subr.mxu0 0.0
    %1694 = vmatpush1.msra.mxu0 0.0
    %1695 = vmatprep.mubr.f32.mxu0 0.0
    %v1696 = vand.u32 %v1612, 4294901760
    %v1697 = vsub.f32 %v1612, %v1696
    %v1698 = vand.u32 %v1697, 4294901760
    %v1699 = vsub.f32 %v1697, %v1698
    %v1700 = vand.u32 %v1699, 4294901760
    %1701 = vmatmul.mubr.f32.gmra.mrb[0].mxu0 %v1700
    %v1702 = vpop.f32.mrb[0].mxu0
    %v1703 = vadd.f32 %v1593, %v1702
    %v1704 = vpop.f32.mrb[0].mxu0
    %1705 = vmatprep.mubr.f32.mxu0 0.0
    %v1706 = vand.u32 %v1615, 4294901760
    %v1707 = vsub.f32 %v1615, %v1706
    %v1708 = vand.u32 %v1707, 4294901760
    %v1709 = vsub.f32 %v1707, %v1708
    %v1710 = vand.u32 %v1709, 4294901760
    %1711 = vmatmul.mubr.f32.gmra.mrb[0].mxu0 %v1710
    %v1712 = vpop.f32.mrb[0].mxu0
    %v1713 = vadd.f32 %v1598, %v1712
    %v1714 = vpop.f32.mrb[0].mxu0
    %1715 = vmatprep.mubr.f32.mxu0 0.0
    %v1716 = vand.u32 %v1618, 4294901760
    %v1717 = vsub.f32 %v1618, %v1716
    %v1718 = vand.u32 %v1717, 4294901760
    %v1719 = vsub.f32 %v1717, %v1718
    %v1720 = vand.u32 %v1719, 4294901760
    %1721 = vmatmul.mubr.f32.gmra.mrb[0].mxu0 %v1720
    %v1722 = vpop.f32.mrb[0].mxu0
    %v1723 = vadd.f32 %v1603, %v1722
    %v1724 = vpop.f32.mrb[0].mxu0
    %1725 = vmatprep.mubr.f32.mxu0 0.0
    %v1726 = vand.u32 %v1621, 4294901760
    %v1727 = vsub.f32 %v1621, %v1726
    %v1728 = vand.u32 %v1727, 4294901760
    %v1729 = vsub.f32 %v1727, %v1728
    %v1730 = vand.u32 %v1729, 4294901760
    %1731 = vmatmul.mubr.f32.gmra.mrb[0].mxu0 %v1730
    %v1732 = vpop.f32.mrb[0].mxu0
    %v1733 = vadd.f32 %v1608, %v1732
    %v1734 = vpop.f32.mrb[0].mxu0
    %1735 = vdwg.mxu0
    %1736 = vmatprep.subr.mxu0 0.0
    %v1737 = vand.u32 %v47, 4294901760
    %v1738 = vsub.f32 %v47, %v1737
    %v1739 = vand.u32 %v1738, 4294901760
    %v1740 = vsub.f32 %v1738, %v1739
    %v1741 = vand.u32 %v1740, 4294901760
    %1742 = vmatpush1.msra.mxu0 %v1741
    %1743 = vmatprep.subr.mxu0 0.0
    %v1744 = vand.u32 %v48, 4294901760
    %v1745 = vsub.f32 %v48, %v1744
    %v1746 = vand.u32 %v1745, 4294901760
    %v1747 = vsub.f32 %v1745, %v1746
    %v1748 = vand.u32 %v1747, 4294901760
    %1749 = vmatpush1.msra.mxu0 %v1748
    %1750 = vmatprep.subr.mxu0 0.0
    %v1751 = vand.u32 %v549, 4294901760
    %v1752 = vsub.f32 %v549, %v1751
    %v1753 = vand.u32 %v1752, 4294901760
    %v1754 = vsub.f32 %v1752, %v1753
    %v1755 = vand.u32 %v1754, 4294901760
    %1756 = vmatpush1.msra.mxu0 %v1755
    %1757 = vmatprep.subr.mxu0 0.0
    %v1758 = vand.u32 %v555, 4294901760
    %v1759 = vsub.f32 %v555, %v1758
    %v1760 = vand.u32 %v1759, 4294901760
    %v1761 = vsub.f32 %v1759, %v1760
    %v1762 = vand.u32 %v1761, 4294901760
    %1763 = vmatpush1.msra.mxu0 %v1762
    %1764 = vmatprep.subr.mxu0 0.0
    %v1765 = vand.u32 %v1068, 4294901760
    %v1766 = vsub.f32 %v1068, %v1765
    %v1767 = vand.u32 %v1766, 4294901760
    %v1768 = vsub.f32 %v1766, %v1767
    %v1769 = vand.u32 %v1768, 4294901760
    %1770 = vmatpush1.msra.mxu0 %v1769
    %1771 = vmatprep.subr.mxu0 0.0
    %v1772 = vand.u32 %v1069, 4294901760
    %v1773 = vsub.f32 %v1069, %v1772
    %v1774 = vand.u32 %v1773, 4294901760
    %v1775 = vsub.f32 %v1773, %v1774
    %v1776 = vand.u32 %v1775, 4294901760
    %1777 = vmatpush1.msra.mxu0 %v1776
    %1778 = vmatprep.subr.mxu0 0.0
    %v1779 = vand.u32 %v1580, 4294901760
    %v1780 = vsub.f32 %v1580, %v1779
    %v1781 = vand.u32 %v1780, 4294901760
    %v1782 = vsub.f32 %v1780, %v1781
    %v1783 = vand.u32 %v1782, 4294901760
    %1784 = vmatpush1.msra.mxu0 %v1783
    %1785 = vmatprep.subr.mxu0 0.0
    %v1786 = vand.u32 %v1581, 4294901760
    %v1787 = vsub.f32 %v1581, %v1786
    %v1788 = vand.u32 %v1787, 4294901760
    %v1789 = vsub.f32 %v1787, %v1788
    %v1790 = vand.u32 %v1789, 4294901760
    %1791 = vmatpush1.msra.mxu0 %v1790
    %1792 = vmatprep.subr.mxu0 0.0
    %1793 = vmatpush1.msra.mxu0 0.0
    %1794 = vmatprep.subr.mxu0 0.0
    %1795 = vmatpush1.msra.mxu0 0.0
    %1796 = vmatprep.subr.mxu0 0.0
    %1797 = vmatpush1.msra.mxu0 0.0
    %1798 = vmatprep.subr.mxu0 0.0
    %1799 = vmatpush1.msra.mxu0 0.0
    %1800 = vmatprep.subr.mxu0 0.0
    %1801 = vmatpush1.msra.mxu0 0.0
    %1802 = vmatprep.subr.mxu0 0.0
    %1803 = vmatpush1.msra.mxu0 0.0
    %1804 = vmatprep.subr.mxu0 0.0
    %1805 = vmatpush1.msra.mxu0 0.0
    %1806 = vmatprep.subr.mxu0 0.0
    %1807 = vmatpush1.msra.mxu0 0.0
    %1808 = vmatprep.subr.mxu0 0.0
    %1809 = vmatpush1.msra.mxu0 0.0
    %1810 = vmatprep.subr.mxu0 0.0
    %1811 = vmatpush1.msra.mxu0 0.0
    %1812 = vmatprep.subr.mxu0 0.0
    %1813 = vmatpush1.msra.mxu0 0.0
    %1814 = vmatprep.subr.mxu0 0.0
    %1815 = vmatpush1.msra.mxu0 0.0
    %1816 = vmatprep.subr.mxu0 0.0
    %1817 = vmatpush1.msra.mxu0 0.0
    %1818 = vmatprep.subr.mxu0 0.0
    %1819 = vmatpush1.msra.mxu0 0.0
    %1820 = vmatprep.subr.mxu0 0.0
    %1821 = vmatpush1.msra.mxu0 0.0
    %1822 = vmatprep.subr.mxu0 0.0
    %1823 = vmatpush1.msra.mxu0 0.0
    %1824 = vmatprep.subr.mxu0 0.0
    %1825 = vmatpush1.msra.mxu0 0.0
    %1826 = vmatprep.subr.mxu0 0.0
    %1827 = vmatpush1.msra.mxu0 0.0
    %1828 = vmatprep.subr.mxu0 0.0
    %1829 = vmatpush1.msra.mxu0 0.0
    %1830 = vmatprep.subr.mxu0 0.0
    %1831 = vmatpush1.msra.mxu0 0.0
    %1832 = vmatprep.subr.mxu0 0.0
    %1833 = vmatpush1.msra.mxu0 0.0
    %1834 = vmatprep.subr.mxu0 0.0
    %1835 = vmatpush1.msra.mxu0 0.0
    %1836 = vmatprep.subr.mxu0 0.0
    %1837 = vmatpush1.msra.mxu0 0.0
    %1838 = vmatprep.subr.mxu0 0.0
    %1839 = vmatpush1.msra.mxu0 0.0
    %1840 = vmatprep.mubr.f32.mxu0 0.0
    %v1841 = vand.u32 %v1612, 4294901760
    %1842 = vmatmul.mubr.f32.gmra.mrb[0].mxu0 %v1841
    %v1843 = vpop.f32.mrb[0].mxu0
    %v1844 = vadd.f32 %v1703, %v1843
    %v1845 = vpop.f32.mrb[0].mxu0
    %1846 = vmatprep.mubr.f32.mxu0 0.0
    %v1847 = vand.u32 %v1615, 4294901760
    %1848 = vmatmul.mubr.f32.gmra.mrb[0].mxu0 %v1847
    %v1849 = vpop.f32.mrb[0].mxu0
    %v1850 = vadd.f32 %v1713, %v1849
    %v1851 = vpop.f32.mrb[0].mxu0
    %1852 = vmatprep.mubr.f32.mxu0 0.0
    %v1853 = vand.u32 %v1618, 4294901760
    %1854 = vmatmul.mubr.f32.gmra.mrb[0].mxu0 %v1853
    %v1855 = vpop.f32.mrb[0].mxu0
    %v1856 = vadd.f32 %v1723, %v1855
    %v1857 = vpop.f32.mrb[0].mxu0
    %1858 = vmatprep.mubr.f32.mxu0 0.0
    %v1859 = vand.u32 %v1621, 4294901760
    %1860 = vmatmul.mubr.f32.gmra.mrb[0].mxu0 %v1859
    %v1861 = vpop.f32.mrb[0].mxu0
    %v1862 = vadd.f32 %v1733, %v1861
    %v1863 = vpop.f32.mrb[0].mxu0
    %1864 = vdwg.mxu0
    %1865 = vmatprep.subr.mxu0 0.0
    %v1866 = vand.u32 %v47, 4294901760
    %v1867 = vsub.f32 %v47, %v1866
    %1868 = vmatpush1.msra.mxu0 %v1867
    %1869 = vmatprep.subr.mxu0 0.0
    %v1870 = vand.u32 %v48, 4294901760
    %v1871 = vsub.f32 %v48, %v1870
    %1872 = vmatpush1.msra.mxu0 %v1871
    %1873 = vmatprep.subr.mxu0 0.0
    %v1874 = vand.u32 %v549, 4294901760
    %v1875 = vsub.f32 %v549, %v1874
    %1876 = vmatpush1.msra.mxu0 %v1875
    %1877 = vmatprep.subr.mxu0 0.0
    %v1878 = vand.u32 %v555, 4294901760
    %v1879 = vsub.f32 %v555, %v1878
    %1880 = vmatpush1.msra.mxu0 %v1879
    %1881 = vmatprep.subr.mxu0 0.0
    %v1882 = vand.u32 %v1068, 4294901760
    %v1883 = vsub.f32 %v1068, %v1882
    %1884 = vmatpush1.msra.mxu0 %v1883
    %1885 = vmatprep.subr.mxu0 0.0
    %v1886 = vand.u32 %v1069, 4294901760
    %v1887 = vsub.f32 %v1069, %v1886
    %1888 = vmatpush1.msra.mxu0 %v1887
    %1889 = vmatprep.subr.mxu0 0.0
    %v1890 = vand.u32 %v1580, 4294901760
    %v1891 = vsub.f32 %v1580, %v1890
    %1892 = vmatpush1.msra.mxu0 %v1891
    %1893 = vmatprep.subr.mxu0 0.0
    %v1894 = vand.u32 %v1581, 4294901760
    %v1895 = vsub.f32 %v1581, %v1894
    %1896 = vmatpush1.msra.mxu0 %v1895
    %1897 = vmatprep.subr.mxu0 0.0
    %1898 = vmatpush1.msra.mxu0 0.0
    %1899 = vmatprep.subr.mxu0 0.0
    %1900 = vmatpush1.msra.mxu0 0.0
    %1901 = vmatprep.subr.mxu0 0.0
    %1902 = vmatpush1.msra.mxu0 0.0
    %1903 = vmatprep.subr.mxu0 0.0
    %1904 = vmatpush1.msra.mxu0 0.0
    %1905 = vmatprep.subr.mxu0 0.0
    %1906 = vmatpush1.msra.mxu0 0.0
    %1907 = vmatprep.subr.mxu0 0.0
    %1908 = vmatpush1.msra.mxu0 0.0
    %1909 = vmatprep.subr.mxu0 0.0
    %1910 = vmatpush1.msra.mxu0 0.0
    %1911 = vmatprep.subr.mxu0 0.0
    %1912 = vmatpush1.msra.mxu0 0.0
    %1913 = vmatprep.subr.mxu0 0.0
    %1914 = vmatpush1.msra.mxu0 0.0
    %1915 = vmatprep.subr.mxu0 0.0
    %1916 = vmatpush1.msra.mxu0 0.0
    %1917 = vmatprep.subr.mxu0 0.0
    %1918 = vmatpush1.msra.mxu0 0.0
    %1919 = vmatprep.subr.mxu0 0.0
    %1920 = vmatpush1.msra.mxu0 0.0
    %1921 = vmatprep.subr.mxu0 0.0
    %1922 = vmatpush1.msra.mxu0 0.0
    %1923 = vmatprep.subr.mxu0 0.0
    %1924 = vmatpush1.msra.mxu0 0.0
    %1925 = vmatprep.subr.mxu0 0.0
    %1926 = vmatpush1.msra.mxu0 0.0
    %1927 = vmatprep.subr.mxu0 0.0
    %1928 = vmatpush1.msra.mxu0 0.0
    %1929 = vmatprep.subr.mxu0 0.0
    %1930 = vmatpush1.msra.mxu0 0.0
    %1931 = vmatprep.subr.mxu0 0.0
    %1932 = vmatpush1.msra.mxu0 0.0
    %1933 = vmatprep.subr.mxu0 0.0
    %1934 = vmatpush1.msra.mxu0 0.0
    %1935 = vmatprep.subr.mxu0 0.0
    %1936 = vmatpush1.msra.mxu0 0.0
    %1937 = vmatprep.subr.mxu0 0.0
    %1938 = vmatpush1.msra.mxu0 0.0
    %1939 = vmatprep.subr.mxu0 0.0
    %1940 = vmatpush1.msra.mxu0 0.0
    %1941 = vmatprep.subr.mxu0 0.0
    %1942 = vmatpush1.msra.mxu0 0.0
    %1943 = vmatprep.subr.mxu0 0.0
    %1944 = vmatpush1.msra.mxu0 0.0
    %1945 = vmatprep.mubr.f32.mxu0 0.0
    %v1946 = vand.u32 %v1612, 4294901760
    %v1947 = vsub.f32 %v1612, %v1946
    %1948 = vmatmul.mubr.f32.gmra.mrb[0].mxu0 %v1947
    %v1949 = vpop.f32.mrb[0].mxu0
    %v1950 = vadd.f32 %v1844, %v1949
    %v1951 = vpop.f32.mrb[0].mxu0
    %1952 = vmatprep.mubr.f32.mxu0 0.0
    %v1953 = vand.u32 %v1615, 4294901760
    %v1954 = vsub.f32 %v1615, %v1953
    %1955 = vmatmul.mubr.f32.gmra.mrb[0].mxu0 %v1954
    %v1956 = vpop.f32.mrb[0].mxu0
    %v1957 = vadd.f32 %v1850, %v1956
    %v1958 = vpop.f32.mrb[0].mxu0
    %1959 = vmatprep.mubr.f32.mxu0 0.0
    %v1960 = vand.u32 %v1618, 4294901760
    %v1961 = vsub.f32 %v1618, %v1960
    %1962 = vmatmul.mubr.f32.gmra.mrb[0].mxu0 %v1961
    %v1963 = vpop.f32.mrb[0].mxu0
    %v1964 = vadd.f32 %v1856, %v1963
    %v1965 = vpop.f32.mrb[0].mxu0
    %1966 = vmatprep.mubr.f32.mxu0 0.0
    %v1967 = vand.u32 %v1621, 4294901760
    %v1968 = vsub.f32 %v1621, %v1967
    %1969 = vmatmul.mubr.f32.gmra.mrb[0].mxu0 %v1968
    %v1970 = vpop.f32.mrb[0].mxu0
    %v1971 = vadd.f32 %v1862, %v1970
    %v1972 = vpop.f32.mrb[0].mxu0
    %1973 = vdwg.mxu0
    %1974 = vmatprep.subr.mxu0 0.0
    %v1975 = vand.u32 %v47, 4294901760
    %1976 = vmatpush1.msra.mxu0 %v1975
    %1977 = vmatprep.subr.mxu0 0.0
    %v1978 = vand.u32 %v48, 4294901760
    %1979 = vmatpush1.msra.mxu0 %v1978
    %1980 = vmatprep.subr.mxu0 0.0
    %v1981 = vand.u32 %v549, 4294901760
    %1982 = vmatpush1.msra.mxu0 %v1981
    %1983 = vmatprep.subr.mxu0 0.0
    %v1984 = vand.u32 %v555, 4294901760
    %1985 = vmatpush1.msra.mxu0 %v1984
    %1986 = vmatprep.subr.mxu0 0.0
    %v1987 = vand.u32 %v1068, 4294901760
    %1988 = vmatpush1.msra.mxu0 %v1987
    %1989 = vmatprep.subr.mxu0 0.0
    %v1990 = vand.u32 %v1069, 4294901760
    %1991 = vmatpush1.msra.mxu0 %v1990
    %1992 = vmatprep.subr.mxu0 0.0
    %v1993 = vand.u32 %v1580, 4294901760
    %1994 = vmatpush1.msra.mxu0 %v1993
    %1995 = vmatprep.subr.mxu0 0.0
    %v1996 = vand.u32 %v1581, 4294901760
    %1997 = vmatpush1.msra.mxu0 %v1996
    %1998 = vmatprep.subr.mxu0 0.0
    %1999 = vmatpush1.msra.mxu0 0.0
    %2000 = vmatprep.subr.mxu0 0.0
    %2001 = vmatpush1.msra.mxu0 0.0
    %2002 = vmatprep.subr.mxu0 0.0
    %2003 = vmatpush1.msra.mxu0 0.0
    %2004 = vmatprep.subr.mxu0 0.0
    %2005 = vmatpush1.msra.mxu0 0.0
    %2006 = vmatprep.subr.mxu0 0.0
    %2007 = vmatpush1.msra.mxu0 0.0
    %2008 = vmatprep.subr.mxu0 0.0
    %2009 = vmatpush1.msra.mxu0 0.0
    %2010 = vmatprep.subr.mxu0 0.0
    %2011 = vmatpush1.msra.mxu0 0.0
    %2012 = vmatprep.subr.mxu0 0.0
    %2013 = vmatpush1.msra.mxu0 0.0
    %2014 = vmatprep.subr.mxu0 0.0
    %2015 = vmatpush1.msra.mxu0 0.0
    %2016 = vmatprep.subr.mxu0 0.0
    %2017 = vmatpush1.msra.mxu0 0.0
    %2018 = vmatprep.subr.mxu0 0.0
    %2019 = vmatpush1.msra.mxu0 0.0
    %2020 = vmatprep.subr.mxu0 0.0
    %2021 = vmatpush1.msra.mxu0 0.0
    %2022 = vmatprep.subr.mxu0 0.0
    %2023 = vmatpush1.msra.mxu0 0.0
    %2024 = vmatprep.subr.mxu0 0.0
    %2025 = vmatpush1.msra.mxu0 0.0
    %2026 = vmatprep.subr.mxu0 0.0
    %2027 = vmatpush1.msra.mxu0 0.0
    %2028 = vmatprep.subr.mxu0 0.0
    %2029 = vmatpush1.msra.mxu0 0.0
    %2030 = vmatprep.subr.mxu0 0.0
    %2031 = vmatpush1.msra.mxu0 0.0
    %2032 = vmatprep.subr.mxu0 0.0
    %2033 = vmatpush1.msra.mxu0 0.0
    %2034 = vmatprep.subr.mxu0 0.0
    %2035 = vmatpush1.msra.mxu0 0.0
    %2036 = vmatprep.subr.mxu0 0.0
    %2037 = vmatpush1.msra.mxu0 0.0
    %2038 = vmatprep.subr.mxu0 0.0
    %2039 = vmatpush1.msra.mxu0 0.0
    %2040 = vmatprep.subr.mxu0 0.0
    %2041 = vmatpush1.msra.mxu0 0.0
    %2042 = vmatprep.subr.mxu0 0.0
    %2043 = vmatpush1.msra.mxu0 0.0
    %2044 = vmatprep.subr.mxu0 0.0
    %2045 = vmatpush1.msra.mxu0 0.0
    %2046 = vmatprep.mubr.f32.mxu0 0.0
    %v2047 = vand.u32 %v1612, 4294901760
    %v2048 = vsub.f32 %v1612, %v2047
    %v2049 = vand.u32 %v2048, 4294901760
    %2050 = vmatmul.mubr.f32.gmra.mrb[0].mxu0 %v2049
    %v2051 = vpop.f32.mrb[0].mxu0
    %v2052 = vadd.f32 %v1950, %v2051
    %v2053 = vpop.f32.mrb[0].mxu0
    %2054 = vmatprep.mubr.f32.mxu0 0.0
    %v2055 = vand.u32 %v1615, 4294901760
    %v2056 = vsub.f32 %v1615, %v2055
    %v2057 = vand.u32 %v2056, 4294901760
    %2058 = vmatmul.mubr.f32.gmra.mrb[0].mxu0 %v2057
    %v2059 = vpop.f32.mrb[0].mxu0
    %v2060 = vadd.f32 %v1957, %v2059
    %v2061 = vpop.f32.mrb[0].mxu0
    %2062 = vmatprep.mubr.f32.mxu0 0.0
    %v2063 = vand.u32 %v1618, 4294901760
    %v2064 = vsub.f32 %v1618, %v2063
    %v2065 = vand.u32 %v2064, 4294901760
    %2066 = vmatmul.mubr.f32.gmra.mrb[0].mxu0 %v2065
    %v2067 = vpop.f32.mrb[0].mxu0
    %v2068 = vadd.f32 %v1964, %v2067
    %v2069 = vpop.f32.mrb[0].mxu0
    %2070 = vmatprep.mubr.f32.mxu0 0.0
    %v2071 = vand.u32 %v1621, 4294901760
    %v2072 = vsub.f32 %v1621, %v2071
    %v2073 = vand.u32 %v2072, 4294901760
    %2074 = vmatmul.mubr.f32.gmra.mrb[0].mxu0 %v2073
    %v2075 = vpop.f32.mrb[0].mxu0
    %v2076 = vadd.f32 %v1971, %v2075
    %v2077 = vpop.f32.mrb[0].mxu0
    %2078 = vdwg.mxu0
    %2079 = vmatprep.subr.mxu0 0.0
    %v2080 = vand.u32 %v47, 4294901760
    %v2081 = vsub.f32 %v47, %v2080
    %v2082 = vand.u32 %v2081, 4294901760
    %2083 = vmatpush1.msra.mxu0 %v2082
    %2084 = vmatprep.subr.mxu0 0.0
    %v2085 = vand.u32 %v48, 4294901760
    %v2086 = vsub.f32 %v48, %v2085
    %v2087 = vand.u32 %v2086, 4294901760
    %2088 = vmatpush1.msra.mxu0 %v2087
    %2089 = vmatprep.subr.mxu0 0.0
    %v2090 = vand.u32 %v549, 4294901760
    %v2091 = vsub.f32 %v549, %v2090
    %v2092 = vand.u32 %v2091, 4294901760
    %2093 = vmatpush1.msra.mxu0 %v2092
    %2094 = vmatprep.subr.mxu0 0.0
    %v2095 = vand.u32 %v555, 4294901760
    %v2096 = vsub.f32 %v555, %v2095
    %v2097 = vand.u32 %v2096, 4294901760
    %2098 = vmatpush1.msra.mxu0 %v2097
    %2099 = vmatprep.subr.mxu0 0.0
    %v2100 = vand.u32 %v1068, 4294901760
    %v2101 = vsub.f32 %v1068, %v2100
    %v2102 = vand.u32 %v2101, 4294901760
    %2103 = vmatpush1.msra.mxu0 %v2102
    %2104 = vmatprep.subr.mxu0 0.0
    %v2105 = vand.u32 %v1069, 4294901760
    %v2106 = vsub.f32 %v1069, %v2105
    %v2107 = vand.u32 %v2106, 4294901760
    %2108 = vmatpush1.msra.mxu0 %v2107
    %2109 = vmatprep.subr.mxu0 0.0
    %v2110 = vand.u32 %v1580, 4294901760
    %v2111 = vsub.f32 %v1580, %v2110
    %v2112 = vand.u32 %v2111, 4294901760
    %2113 = vmatpush1.msra.mxu0 %v2112
    %2114 = vmatprep.subr.mxu0 0.0
    %v2115 = vand.u32 %v1581, 4294901760
    %v2116 = vsub.f32 %v1581, %v2115
    %v2117 = vand.u32 %v2116, 4294901760
    %2118 = vmatpush1.msra.mxu0 %v2117
    %2119 = vmatprep.subr.mxu0 0.0
    %2120 = vmatpush1.msra.mxu0 0.0
    %2121 = vmatprep.subr.mxu0 0.0
    %2122 = vmatpush1.msra.mxu0 0.0
    %2123 = vmatprep.subr.mxu0 0.0
    %2124 = vmatpush1.msra.mxu0 0.0
    %2125 = vmatprep.subr.mxu0 0.0
    %2126 = vmatpush1.msra.mxu0 0.0
    %2127 = vmatprep.subr.mxu0 0.0
    %2128 = vmatpush1.msra.mxu0 0.0
    %2129 = vmatprep.subr.mxu0 0.0
    %2130 = vmatpush1.msra.mxu0 0.0
    %2131 = vmatprep.subr.mxu0 0.0
    %2132 = vmatpush1.msra.mxu0 0.0
    %2133 = vmatprep.subr.mxu0 0.0
    %2134 = vmatpush1.msra.mxu0 0.0
    %2135 = vmatprep.subr.mxu0 0.0
    %2136 = vmatpush1.msra.mxu0 0.0
    %2137 = vmatprep.subr.mxu0 0.0
    %2138 = vmatpush1.msra.mxu0 0.0
    %2139 = vmatprep.subr.mxu0 0.0
    %2140 = vmatpush1.msra.mxu0 0.0
    %2141 = vmatprep.subr.mxu0 0.0
    %2142 = vmatpush1.msra.mxu0 0.0
    %2143 = vmatprep.subr.mxu0 0.0
    %2144 = vmatpush1.msra.mxu0 0.0
    %2145 = vmatprep.subr.mxu0 0.0
    %2146 = vmatpush1.msra.mxu0 0.0
    %2147 = vmatprep.subr.mxu0 0.0
    %2148 = vmatpush1.msra.mxu0 0.0
    %2149 = vmatprep.subr.mxu0 0.0
    %2150 = vmatpush1.msra.mxu0 0.0
    %2151 = vmatprep.subr.mxu0 0.0
    %2152 = vmatpush1.msra.mxu0 0.0
    %2153 = vmatprep.subr.mxu0 0.0
    %2154 = vmatpush1.msra.mxu0 0.0
    %2155 = vmatprep.subr.mxu0 0.0
    %2156 = vmatpush1.msra.mxu0 0.0
    %2157 = vmatprep.subr.mxu0 0.0
    %2158 = vmatpush1.msra.mxu0 0.0
    %2159 = vmatprep.subr.mxu0 0.0
    %2160 = vmatpush1.msra.mxu0 0.0
    %2161 = vmatprep.subr.mxu0 0.0
    %2162 = vmatpush1.msra.mxu0 0.0
    %2163 = vmatprep.subr.mxu0 0.0
    %2164 = vmatpush1.msra.mxu0 0.0
    %2165 = vmatprep.subr.mxu0 0.0
    %2166 = vmatpush1.msra.mxu0 0.0
    %2167 = vmatprep.mubr.f32.mxu0 0.0
    %v2168 = vand.u32 %v1612, 4294901760
    %2169 = vmatmul.mubr.f32.gmra.mrb[0].mxu0 %v2168
    %v2170 = vpop.f32.mrb[0].mxu0
    %v2171 = vadd.f32 %v2052, %v2170
    %v2172 = vpop.f32.mrb[0].mxu0
    %2173 = vmatprep.mubr.f32.mxu0 0.0
    %v2174 = vand.u32 %v1615, 4294901760
    %2175 = vmatmul.mubr.f32.gmra.mrb[0].mxu0 %v2174
    %v2176 = vpop.f32.mrb[0].mxu0
    %v2177 = vadd.f32 %v2060, %v2176
    %v2178 = vpop.f32.mrb[0].mxu0
    %2179 = vmatprep.mubr.f32.mxu0 0.0
    %v2180 = vand.u32 %v1618, 4294901760
    %2181 = vmatmul.mubr.f32.gmra.mrb[0].mxu0 %v2180
    %v2182 = vpop.f32.mrb[0].mxu0
    %v2183 = vadd.f32 %v2068, %v2182
    %v2184 = vpop.f32.mrb[0].mxu0
    %2185 = vmatprep.mubr.f32.mxu0 0.0
    %v2186 = vand.u32 %v1621, 4294901760
    %2187 = vmatmul.mubr.f32.gmra.mrb[0].mxu0 %v2186
    %v2188 = vpop.f32.mrb[0].mxu0
    %v2189 = vadd.f32 %v2076, %v2188
    %v2190 = vpop.f32.mrb[0].mxu0
    %2191 = vdwg.mxu0
    %2192 = vmatprep.subr.mxu0 0.0
    %v2193 = vand.u32 %v47, 4294901760
    %2194 = vmatpush1.msra.mxu0 %v2193
    %2195 = vmatprep.subr.mxu0 0.0
    %v2196 = vand.u32 %v48, 4294901760
    %2197 = vmatpush1.msra.mxu0 %v2196
    %2198 = vmatprep.subr.mxu0 0.0
    %v2199 = vand.u32 %v549, 4294901760
    %2200 = vmatpush1.msra.mxu0 %v2199
    %2201 = vmatprep.subr.mxu0 0.0
    %v2202 = vand.u32 %v555, 4294901760
    %2203 = vmatpush1.msra.mxu0 %v2202
    %2204 = vmatprep.subr.mxu0 0.0
    %v2205 = vand.u32 %v1068, 4294901760
    %2206 = vmatpush1.msra.mxu0 %v2205
    %2207 = vmatprep.subr.mxu0 0.0
    %v2208 = vand.u32 %v1069, 4294901760
    %2209 = vmatpush1.msra.mxu0 %v2208
    %2210 = vmatprep.subr.mxu0 0.0
    %v2211 = vand.u32 %v1580, 4294901760
    %2212 = vmatpush1.msra.mxu0 %v2211
    %2213 = vmatprep.subr.mxu0 0.0
    %v2214 = vand.u32 %v1581, 4294901760
    %2215 = vmatpush1.msra.mxu0 %v2214
    %2216 = vmatprep.subr.mxu0 0.0
    %2217 = vmatpush1.msra.mxu0 0.0
    %2218 = vmatprep.subr.mxu0 0.0
    %2219 = vmatpush1.msra.mxu0 0.0
    %2220 = vmatprep.subr.mxu0 0.0
    %2221 = vmatpush1.msra.mxu0 0.0
    %2222 = vmatprep.subr.mxu0 0.0
    %2223 = vmatpush1.msra.mxu0 0.0
    %2224 = vmatprep.subr.mxu0 0.0
    %2225 = vmatpush1.msra.mxu0 0.0
    %2226 = vmatprep.subr.mxu0 0.0
    %2227 = vmatpush1.msra.mxu0 0.0
    %2228 = vmatprep.subr.mxu0 0.0
    %2229 = vmatpush1.msra.mxu0 0.0
    %2230 = vmatprep.subr.mxu0 0.0
    %2231 = vmatpush1.msra.mxu0 0.0
    %2232 = vmatprep.subr.mxu0 0.0
    %2233 = vmatpush1.msra.mxu0 0.0
    %2234 = vmatprep.subr.mxu0 0.0
    %2235 = vmatpush1.msra.mxu0 0.0
    %2236 = vmatprep.subr.mxu0 0.0
    %2237 = vmatpush1.msra.mxu0 0.0
    %2238 = vmatprep.subr.mxu0 0.0
    %2239 = vmatpush1.msra.mxu0 0.0
    %2240 = vmatprep.subr.mxu0 0.0
    %2241 = vmatpush1.msra.mxu0 0.0
    %2242 = vmatprep.subr.mxu0 0.0
    %2243 = vmatpush1.msra.mxu0 0.0
    %2244 = vmatprep.subr.mxu0 0.0
    %2245 = vmatpush1.msra.mxu0 0.0
    %2246 = vmatprep.subr.mxu0 0.0
    %2247 = vmatpush1.msra.mxu0 0.0
    %2248 = vmatprep.subr.mxu0 0.0
    %2249 = vmatpush1.msra.mxu0 0.0
    %2250 = vmatprep.subr.mxu0 0.0
    %2251 = vmatpush1.msra.mxu0 0.0
    %2252 = vmatprep.subr.mxu0 0.0
    %2253 = vmatpush1.msra.mxu0 0.0
    %2254 = vmatprep.subr.mxu0 0.0
    %2255 = vmatpush1.msra.mxu0 0.0
    %2256 = vmatprep.subr.mxu0 0.0
    %2257 = vmatpush1.msra.mxu0 0.0
    %2258 = vmatprep.subr.mxu0 0.0
    %2259 = vmatpush1.msra.mxu0 0.0
    %2260 = vmatprep.subr.mxu0 0.0
    %2261 = vmatpush1.msra.mxu0 0.0
    %2262 = vmatprep.subr.mxu0 0.0
    %2263 = vmatpush1.msra.mxu0 0.0
    %2264 = vmatprep.mubr.f32.mxu0 0.0
    %v2265 = vand.u32 %v1612, 4294901760
    %2266 = vmatmul.mubr.f32.gmra.mrb[0].mxu0 %v2265
    %v2267 = vpop.f32.mrb[0].mxu0
    %v2268 = vadd.f32 %v2171, %v2267
    %v2269 = vpop.f32.mrb[0].mxu0
    %2270 = vmatprep.mubr.f32.mxu0 0.0
    %v2271 = vand.u32 %v1615, 4294901760
    %2272 = vmatmul.mubr.f32.gmra.mrb[0].mxu0 %v2271
    %v2273 = vpop.f32.mrb[0].mxu0
    %v2274 = vadd.f32 %v2177, %v2273
    %v2275 = vpop.f32.mrb[0].mxu0
    %2276 = vmatprep.mubr.f32.mxu0 0.0
    %v2277 = vand.u32 %v1618, 4294901760
    %2278 = vmatmul.mubr.f32.gmra.mrb[0].mxu0 %v2277
    %v2279 = vpop.f32.mrb[0].mxu0
    %v2280 = vadd.f32 %v2183, %v2279
    %v2281 = vpop.f32.mrb[0].mxu0
    %2282 = vmatprep.mubr.f32.mxu0 0.0
    %v2283 = vand.u32 %v1621, 4294901760
    %2284 = vmatmul.mubr.f32.gmra.mrb[0].mxu0 %v2283
    %v2285 = vpop.f32.mrb[0].mxu0
    %v2286 = vadd.f32 %v2189, %v2285
    %v2287 = vpop.f32.mrb[0].mxu0
    %2288 = vdwg.mxu0
    %2289 = vst.msk [vmem:[%s4] sm:$0xff] %vm49, %v2268
    %2290 = vst.msk [vmem:[%s4 + $0x8] sm:$0xff] %vm49, %v2274
    %2291 = vst.msk [vmem:[%s4 + $0x10] sm:$0xff] %vm49, %v2280
    %2292 = vst.msk [vmem:[%s4 + $0x18] sm:$0xff] %vm49, %v2286
    // Predicated region
    $region26: #{tpu_custom_call.1} parent=1 // pred_check
      _
    $region27: #{tpu_custom_call.1} parent=1 // pred_check_branch
      %2294 = sbr.rel (0) target = $region29
    $region28: #{tpu_custom_call.1} parent=1 // pred_region
      _
    $region29: #{tpu_custom_call.1} parent=1 // pred_fallthru
      _
    // Predicated region
    $region30: #{tpu_custom_call.1} parent=1 // pred_check
      _
    $region31: #{tpu_custom_call.1} parent=1 // pred_check_branch
      %2296 = sbr.rel (0) target = $region33
    $region32: #{tpu_custom_call.1} parent=1 // pred_region
      _
    $region33: #{tpu_custom_call.1} parent=1 // pred_fallthru
      _
    %2297 = vsyncpa [#allocation3], 1
    %2298 = vsyncpa [#allocation5], 1

</llo_original>
